<compile_context>
chip_gen: v7x
topology: tpu7x:2x2x1
jax: 0.10.0
libtpu: 0.0.40
codegen_flags: <defaults>
</compile_context>

<pallas_src>
import functools

import jax
import jax.numpy as jnp
from jax import lax
from jax.experimental import pallas as pl
from jax.experimental.pallas import tpu as pltpu


# ---------------------------------------------------------------------------
# Pallas kernel: fused CBAM forward for one (Bt, C, H*W) block
# ---------------------------------------------------------------------------
def cbam_kernel(x_ref, w1t_ref, b1_ref, w2_ref, b2_ref, cw_ref, cb_ref, o_ref,
                *, H, W, ksize):
    Bt, C, HW = x_ref.shape
    Ch = w1t_ref.shape[1]
    P = ksize // 2
    KK = ksize * ksize
    Z = P * W + P                                   # flat zero-extension length

    x = x_ref[...].astype(jnp.float32)              # (Bt, C, HW) lane-dense

    # ---- channel attention: exact pools + tiny MLP (C stays on sublanes) ---
    p_avg = jnp.sum(x, axis=-1, keepdims=True) * (1.0 / HW)   # (Bt, C, 1)
    p_max = jnp.max(x, axis=-1, keepdims=True)                # (Bt, C, 1)
    p = jnp.concatenate([p_avg, p_max], axis=-1)              # (Bt, C, 2)

    # Two-layer MLP shared by both pooled branches.  Ch = C // reduction is
    # small, so an explicit loop on the VPU/XLU is cheaper and layout-safe
    # (no transposes, no under-filled MXU calls, exact f32).
    o_mlp = jnp.zeros((Bt, C, 2), jnp.float32)
    for j in range(Ch):
        hj = jnp.sum(w1t_ref[:, j:j + 1] * p, axis=1, keepdims=True) + b1_ref[j]
        hj = jnp.maximum(hj, 0.0)                             # (Bt, 1, 2)
        o_mlp = o_mlp + w2_ref[:, j:j + 1] * hj               # (Bt, C, 2)
    o_mlp = o_mlp + b2_ref[...]
    ca = jax.nn.sigmoid(o_mlp[:, :, 0:1] + o_mlp[:, :, 1:2])  # (Bt, C, 1)

    # ---- spatial attention input maps (whole block, flat lane-dense) -------
    xc = x * ca                                               # (Bt, C, HW)
    avg_map = jnp.sum(xc, axis=1, keepdims=True) * (1.0 / C)  # (Bt, 1, HW)
    max_map = jnp.max(xc, axis=1, keepdims=True)              # (Bt, 1, HW)

    # Zero-extended flat maps: a tap offset of (dy - P, dx - P) becomes a
    # static lane offset of dy*W + dx into the extension.  Vertical
    # out-of-image reads land in the zero padding automatically; horizontal
    # out-of-image reads (row wrap in flat space) are removed by column masks.
    zpad = jnp.zeros((Bt, 1, Z), jnp.float32)
    ext_a = jnp.concatenate([zpad, avg_map, zpad], axis=-1)   # (Bt, 1, HW+2Z)
    ext_m = jnp.concatenate([zpad, max_map, zpad], axis=-1)

    # Column index of each flat position (no vector int div/mod needed).
    flat = lax.broadcasted_iota(jnp.int32, (1, HW), 1)
    if (W & (W - 1)) == 0:
        col = jnp.bitwise_and(flat, W - 1)
    else:
        row = jnp.zeros((1, HW), jnp.int32)
        for r in range(1, H):
            row = row + (flat >= r * W).astype(jnp.int32)
        col = flat - W * row

    # 7x7 cross-correlation: 49 static lane-offset slices, 7 column masks.
    # TODO(synk): for Bt > 1 with small C the (Bt, 1, HW) conv layout leaves
    # sublanes idle; packing batch into sublanes would tighten the VPU loop.
    acc = jnp.zeros((Bt, 1, HW), jnp.float32)
    for dx in range(ksize):
        part = None
        for dy in range(ksize):
            k = dy * ksize + dx
            off = dy * W + dx
            term = (cw_ref[k] * ext_a[..., off:off + HW]
                    + cw_ref[KK + k] * ext_m[..., off:off + HW])
            part = term if part is None else part + term
        if dx == P:                                           # mask all-true
            acc = acc + part
        else:
            col_ok = jnp.logical_and(col >= (P - dx), col < (W + P - dx))
            acc = acc + jnp.where(col_ok, part, 0.0)
    sp = jax.nn.sigmoid(acc + cb_ref[0])                      # (Bt, 1, HW)

    # ---- fused output: (x * channel_att) * spatial_att, lane-dense store ---
    o_ref[...] = (xc * sp).astype(o_ref.dtype)


# ---------------------------------------------------------------------------
# Wrapper
# ---------------------------------------------------------------------------
def cbam_pallas(x, w1, b1, w2, b2, conv_w, conv_b, *, ksize=7, out_dtype=None,
                block_budget_bytes=None):
    B, C, H, W = x.shape
    HW = H * W
    Ch = w1.shape[0]
    out_dtype = jnp.dtype(x.dtype if out_dtype is None else out_dtype)

    x_flat = x.reshape(B, C, HW)       # lane-dense view; no wrapper dtype cast

    # ----- block sizing: generation-aware VMEM budget ------------------------
    try:
        vmem_cap = int(pltpu.get_tpu_info().vmem_capacity_bytes)  # 64 MiB v7x / 128 MiB v5e,v6e
    except Exception:
        vmem_cap = 64 << 20                                        # conservative fallback
    in_elt = jnp.dtype(x.dtype).itemsize
    out_elt = out_dtype.itemsize
    # double-buffered input + output blocks plus f32 in-kernel temporaries
    per_b_bytes = C * HW * (2 * in_elt + 2 * out_elt + 8)
    budget = int(0.6 * vmem_cap) if block_budget_bytes is None else int(block_budget_bytes)
    bt_cap = max(1, budget // per_b_bytes)
    if B >= 2:
        bt_cap = min(bt_cap, B // 2)   # keep >=2 grid steps: feed both v7x cores
    # TODO(synk): for B == 1 a second "parallel" grid axis (e.g. channel tiles
    # of the scale/store stage) would be needed to keep both v7x cores busy.
    Bt = 1
    for cand in range(min(B, bt_cap), 0, -1):
        if B % cand == 0:
            Bt = cand
            break

    vmem_limit = int(min(max(2 * Bt * per_b_bytes, 32 << 20),
                         int(0.9 * vmem_cap)))

    # ----- parameters (tiny; kept in f32) ------------------------------------
    w1t = jnp.asarray(w1, jnp.float32).T                    # (C, Ch)
    w2f = jnp.asarray(w2, jnp.float32)                      # (C, Ch)
    b1f = jnp.asarray(b1, jnp.float32).reshape(Ch)          # SMEM scalars
    b2c = jnp.asarray(b2, jnp.float32).reshape(C, 1)
    cwf = jnp.asarray(conv_w, jnp.float32).reshape(2 * ksize * ksize)  # SMEM taps
    cbf = jnp.asarray(conv_b, jnp.float32).reshape(1)

    kernel = functools.partial(cbam_kernel, H=H, W=W, ksize=ksize)

    out_flat = pl.pallas_call(
        kernel,
        out_shape=jax.ShapeDtypeStruct((B, C, HW), out_dtype),
        grid_spec=pltpu.PrefetchScalarGridSpec(
            num_scalar_prefetch=0,
            grid=(B // Bt,),
            in_specs=[
                pl.BlockSpec((Bt, C, HW), lambda g: (g, 0, 0)),        # x (flat)
                pl.BlockSpec((C, Ch), lambda g: (0, 0)),               # W1^T
                pl.BlockSpec(memory_space=pltpu.MemorySpace.SMEM),     # b1
                pl.BlockSpec((C, Ch), lambda g: (0, 0)),               # W2
                pl.BlockSpec((C, 1), lambda g: (0, 0)),                # b2
                pl.BlockSpec(memory_space=pltpu.MemorySpace.SMEM),     # conv_w
                pl.BlockSpec(memory_space=pltpu.MemorySpace.SMEM),     # conv_b
            ],
            out_specs=pl.BlockSpec((Bt, C, HW), lambda g: (g, 0, 0)),
        ),
        compiler_params=pltpu.CompilerParams(
            dimension_semantics=("parallel",),
            vmem_limit_bytes=vmem_limit),
    )(x_flat, w1t, b1f, w2f, b2c, cwf, cbf)

    return out_flat.reshape(B, C, H, W)


# ---------------------------------------------------------------------------
# Pure-JAX reference (mirrors the PyTorch forward exactly)
# ---------------------------------------------------------------------------
def cbam_ref(x, w1, b1, w2, b2, conv_w, conv_b, *, ksize=7):
    P = ksize // 2
    avg = x.mean(axis=(2, 3))
    mx = x.max(axis=(2, 3))

    def mlp(v):
        return jnp.maximum(v @ w1.T + b1, 0.0) @ w2.T + b2

    ca = jax.nn.sigmoid(mlp(avg) + mlp(mx))
    x = x * ca[:, :, None, None]

    avg_o = x.mean(axis=1, keepdims=True)
    max_o = x.max(axis=1, keepdims=True)
    sp_in = jnp.concatenate([avg_o, max_o], axis=1)
    conv = lax.conv_general_dilated(
        sp_in, conv_w.reshape(1, 2, ksize, ksize),
        window_strides=(1, 1), padding=((P, P), (P, P)),
        dimension_numbers=("NCHW", "OIHW", "NCHW")) + conv_b[0]
    return x * jax.nn.sigmoid(conv)


# ---------------------------------------------------------------------------
if __name__ == "__main__":
    B, C, H, W = 2, 32, 16, 16
    reduction, ksize = 16, 7
    Ch = C // reduction

    key = jax.random.PRNGKey(0)
    k0, k1, k2, k3, k4, k5, k6 = jax.random.split(key, 7)

    x = jax.random.normal(k0, (B, C, H, W), dtype=jnp.float32)

    # Parameter shapes follow nn.Linear / nn.Conv2d.
    w1 = 0.1 * jax.random.normal(k1, (Ch, C), dtype=jnp.float32)   # Linear(C, Ch).weight
    b1 = 0.1 * jax.random.normal(k2, (Ch,), dtype=jnp.float32)
    w2 = 0.1 * jax.random.normal(k3, (C, Ch), dtype=jnp.float32)   # Linear(Ch, C).weight
    b2 = 0.1 * jax.random.normal(k4, (C,), dtype=jnp.float32)
    conv_w = 0.1 * jax.random.normal(k5, (2, ksize, ksize), dtype=jnp.float32)  # Conv2d(2,1,7)
    conv_b = 0.1 * jax.random.normal(k6, (1,), dtype=jnp.float32)

    # --- f32 in / f32 out ---
    out = jax.block_until_ready(
        cbam_pallas(x, w1, b1, w2, b2, conv_w, conv_b, ksize=ksize))
    with jax.default_matmul_precision("float32"):
        ref = jax.block_until_ready(
            cbam_ref(x, w1, b1, w2, b2, conv_w, conv_b, ksize=ksize))
    assert out.shape == (B, C, H, W)
    err = float(jnp.max(jnp.abs(out - ref)))
    assert jnp.allclose(out, ref, atol=1e-3, rtol=1e-3), f"f32 max abs diff {err}"

    # --- f32 in / bf16 out (saves 25% HBM traffic; all in-kernel math is f32) ---
    out_bf = jax.block_until_ready(
        cbam_pallas(x, w1, b1, w2, b2, conv_w, conv_b, ksize=ksize,
                    out_dtype=jnp.bfloat16))
    err_bf = float(jnp.max(jnp.abs(out_bf.astype(jnp.float32) - ref)))
    assert jnp.allclose(out_bf.astype(jnp.float32), ref, atol=5e-2, rtol=5e-2), \
        f"bf16-out max abs diff {err_bf}"

    print("KERNEL_OK")
</pallas_src>

<mosaic_0001>
module attributes {stable_mosaic.version = 11 : i64} {
  func.func @cbam_kernel(%arg0: i32, %arg1: memref<1x32x256xf32, #tpu.memory_space<vmem>>, %arg2: memref<32x2xf32, #tpu.memory_space<vmem>>, %arg3: memref<2xf32, #tpu.memory_space<smem>>, %arg4: memref<32x2xf32, #tpu.memory_space<vmem>>, %arg5: memref<32x1xf32, #tpu.memory_space<vmem>>, %arg6: memref<98xf32, #tpu.memory_space<smem>>, %arg7: memref<1xf32, #tpu.memory_space<smem>>, %arg8: memref<1x32x256xf32, #tpu.memory_space<vmem>>) attributes {dimension_semantics = [#tpu.dimension_semantics<parallel>], iteration_bounds = array<i64: 2>, scalar_prefetch = 0 : i64, scratch_operands = 0 : i64, tpu.core_type = #tpu.core_type<tc>, window_params = [{transform_indices = @transform_0, window_bounds = array<i64: 1, 32, 256>}, {pipeline_mode = #tpu.pipeline_mode<synchronous>, transform_indices = @transform_1, window_bounds = array<i64: 32, 2>}, {transform_indices = @transform_2, window_bounds = array<i64: 2>}, {pipeline_mode = #tpu.pipeline_mode<synchronous>, transform_indices = @transform_3, window_bounds = array<i64: 32, 2>}, {pipeline_mode = #tpu.pipeline_mode<synchronous>, transform_indices = @transform_4, window_bounds = array<i64: 32, 1>}, {transform_indices = @transform_5, window_bounds = array<i64: 98>}, {transform_indices = @transform_6, window_bounds = array<i64: 1>}, {transform_indices = @transform_7, window_bounds = array<i64: 1, 32, 256>}]} {
    %c0 = arith.constant 0 : index
    %c0_0 = arith.constant 0 : index
    %c0_1 = arith.constant 0 : index
    %0 = vector.load %arg1[%c0, %c0_0, %c0_1] : memref<1x32x256xf32, #tpu.memory_space<vmem>>, vector<1x32x256xf32>
    %cst = arith.constant dense<0.000000e+00> : vector<1x32xf32>
    %1 = vector.multi_reduction <add>, %0, %cst [2] : vector<1x32x256xf32> to vector<1x32xf32>
    %2 = vector.shape_cast %1 : vector<1x32xf32> to vector<1x32x1xf32>
    %cst_2 = arith.constant 3.906250e-03 : f32
    %3 = vector.broadcast %cst_2 : f32 to vector<1x32x1xf32>
    %4 = arith.mulf %2, %3 : vector<1x32x1xf32>
    %cst_3 = arith.constant dense<0xFF800000> : vector<1x32xf32>
    %5 = vector.multi_reduction <maximumf>, %0, %cst_3 [2] : vector<1x32x256xf32> to vector<1x32xf32>
    %6 = vector.shape_cast %5 : vector<1x32xf32> to vector<1x32x1xf32>
    %7 = tpu.concatenate %4, %6 in 2 : vector<1x32x1xf32>, vector<1x32x1xf32> -> vector<1x32x2xf32>
    %cst_4 = arith.constant 0.000000e+00 : f32
    %8 = vector.broadcast %cst_4 : f32 to vector<1x32x2xf32>
    %c0_5 = arith.constant 0 : index
    %c0_6 = arith.constant 0 : index
    %9 = vector.load %arg2[%c0_5, %c0_6] : memref<32x2xf32, #tpu.memory_space<vmem>>, vector<32x1xf32>
    %10 = vector.shape_cast %9 : vector<32x1xf32> to vector<1x32x1xf32>
    %11 = vector.broadcast %10 : vector<1x32x1xf32> to vector<1x32x2xf32>
    %12 = arith.mulf %11, %7 : vector<1x32x2xf32>
    %cst_7 = arith.constant dense<0.000000e+00> : vector<1x2xf32>
    %13 = vector.multi_reduction <add>, %12, %cst_7 [1] : vector<1x32x2xf32> to vector<1x2xf32>
    %14 = vector.shape_cast %13 : vector<1x2xf32> to vector<1x1x2xf32>
    %c0_8 = arith.constant 0 : index
    %15 = memref.load %arg3[%c0_8] : memref<2xf32, #tpu.memory_space<smem>>
    %16 = vector.broadcast %15 : f32 to vector<1x1x2xf32>
    %17 = arith.addf %14, %16 : vector<1x1x2xf32>
    %cst_9 = arith.constant 0.000000e+00 : f32
    %18 = vector.broadcast %cst_9 : f32 to vector<1x1x2xf32>
    %19 = arith.maximumf %17, %18 : vector<1x1x2xf32>
    %c0_10 = arith.constant 0 : index
    %c0_11 = arith.constant 0 : index
    %20 = vector.load %arg4[%c0_10, %c0_11] : memref<32x2xf32, #tpu.memory_space<vmem>>, vector<32x1xf32>
    %21 = vector.shape_cast %20 : vector<32x1xf32> to vector<1x32x1xf32>
    %22 = vector.broadcast %21 : vector<1x32x1xf32> to vector<1x32x2xf32>
    %23 = vector.broadcast %19 : vector<1x1x2xf32> to vector<1x32x2xf32>
    %24 = arith.mulf %22, %23 : vector<1x32x2xf32>
    %25 = arith.addf %8, %24 : vector<1x32x2xf32>
    %c0_12 = arith.constant 0 : index
    %c1 = arith.constant 1 : index
    %26 = vector.load %arg2[%c0_12, %c1] : memref<32x2xf32, #tpu.memory_space<vmem>>, vector<32x1xf32>
    %27 = vector.shape_cast %26 : vector<32x1xf32> to vector<1x32x1xf32>
    %28 = vector.broadcast %27 : vector<1x32x1xf32> to vector<1x32x2xf32>
    %29 = arith.mulf %28, %7 : vector<1x32x2xf32>
    %cst_13 = arith.constant dense<0.000000e+00> : vector<1x2xf32>
    %30 = vector.multi_reduction <add>, %29, %cst_13 [1] : vector<1x32x2xf32> to vector<1x2xf32>
    %31 = vector.shape_cast %30 : vector<1x2xf32> to vector<1x1x2xf32>
    %c1_14 = arith.constant 1 : index
    %32 = memref.load %arg3[%c1_14] : memref<2xf32, #tpu.memory_space<smem>>
    %33 = vector.broadcast %32 : f32 to vector<1x1x2xf32>
    %34 = arith.addf %31, %33 : vector<1x1x2xf32>
    %cst_15 = arith.constant 0.000000e+00 : f32
    %35 = vector.broadcast %cst_15 : f32 to vector<1x1x2xf32>
    %36 = arith.maximumf %34, %35 : vector<1x1x2xf32>
    %c0_16 = arith.constant 0 : index
    %c1_17 = arith.constant 1 : index
    %37 = vector.load %arg4[%c0_16, %c1_17] : memref<32x2xf32, #tpu.memory_space<vmem>>, vector<32x1xf32>
    %38 = vector.shape_cast %37 : vector<32x1xf32> to vector<1x32x1xf32>
    %39 = vector.broadcast %38 : vector<1x32x1xf32> to vector<1x32x2xf32>
    %40 = vector.broadcast %36 : vector<1x1x2xf32> to vector<1x32x2xf32>
    %41 = arith.mulf %39, %40 : vector<1x32x2xf32>
    %42 = arith.addf %25, %41 : vector<1x32x2xf32>
    %c0_18 = arith.constant 0 : index
    %c0_19 = arith.constant 0 : index
    %43 = vector.load %arg5[%c0_18, %c0_19] : memref<32x1xf32, #tpu.memory_space<vmem>>, vector<32x1xf32>
    %44 = vector.shape_cast %43 : vector<32x1xf32> to vector<1x32x1xf32>
    %45 = vector.broadcast %44 : vector<1x32x1xf32> to vector<1x32x2xf32>
    %46 = arith.addf %42, %45 : vector<1x32x2xf32>
    %47 = vector.extract_strided_slice %46 {offsets = [0, 0, 0], sizes = [1, 32, 1], strides = [1, 1, 1]} : vector<1x32x2xf32> to vector<1x32x1xf32>
    %48 = vector.extract_strided_slice %46 {offsets = [0, 0, 1], sizes = [1, 32, 1], strides = [1, 1, 1]} : vector<1x32x2xf32> to vector<1x32x1xf32>
    %49 = arith.addf %47, %48 : vector<1x32x1xf32>
    %50 = arith.negf %49 : vector<1x32x1xf32>
    %51 = math.exp %50 : vector<1x32x1xf32>
    %cst_20 = arith.constant 1.000000e+00 : f32
    %52 = vector.broadcast %cst_20 : f32 to vector<1x32x1xf32>
    %53 = arith.addf %52, %51 : vector<1x32x1xf32>
    %54 = arith.divf %52, %53 : vector<1x32x1xf32>
    %55 = vector.broadcast %54 : vector<1x32x1xf32> to vector<1x32x256xf32>
    %56 = arith.mulf %0, %55 : vector<1x32x256xf32>
    %cst_21 = arith.constant dense<0.000000e+00> : vector<1x256xf32>
    %57 = vector.multi_reduction <add>, %56, %cst_21 [1] : vector<1x32x256xf32> to vector<1x256xf32>
    %58 = vector.shape_cast %57 : vector<1x256xf32> to vector<1x1x256xf32>
    %cst_22 = arith.constant 3.125000e-02 : f32
    %59 = vector.broadcast %cst_22 : f32 to vector<1x1x256xf32>
    %60 = arith.mulf %58, %59 : vector<1x1x256xf32>
    %cst_23 = arith.constant dense<0xFF800000> : vector<1x256xf32>
    %61 = vector.multi_reduction <maximumf>, %56, %cst_23 [1] : vector<1x32x256xf32> to vector<1x256xf32>
    %62 = vector.shape_cast %61 : vector<1x256xf32> to vector<1x1x256xf32>
    %cst_24 = arith.constant 0.000000e+00 : f32
    %63 = vector.broadcast %cst_24 : f32 to vector<1x1x51xf32>
    %64 = tpu.concatenate %63, %60, %63 in 2 : vector<1x1x51xf32>, vector<1x1x256xf32>, vector<1x1x51xf32> -> vector<1x1x358xf32>
    %65 = tpu.concatenate %63, %62, %63 in 2 : vector<1x1x51xf32>, vector<1x1x256xf32>, vector<1x1x51xf32> -> vector<1x1x358xf32>
    %66 = tpu.iota {dimensions = array<i32: 1>} : vector<1x256xi32>
    %c15_i32 = arith.constant 15 : i32
    %67 = vector.broadcast %c15_i32 : i32 to vector<1x256xi32>
    %68 = arith.andi %66, %67 : vector<1x256xi32>
    %cst_25 = arith.constant 0.000000e+00 : f32
    %69 = vector.broadcast %cst_25 : f32 to vector<1x1x256xf32>
    %c0_26 = arith.constant 0 : index
    %70 = memref.load %arg6[%c0_26] : memref<98xf32, #tpu.memory_space<smem>>
    %71 = vector.extract_strided_slice %64 {offsets = [0, 0, 0], sizes = [1, 1, 256], strides = [1, 1, 1]} : vector<1x1x358xf32> to vector<1x1x256xf32>
    %72 = vector.broadcast %70 : f32 to vector<1x1x256xf32>
    %73 = arith.mulf %72, %71 : vector<1x1x256xf32>
    %c49 = arith.constant 49 : index
    %74 = memref.load %arg6[%c49] : memref<98xf32, #tpu.memory_space<smem>>
    %75 = vector.extract_strided_slice %65 {offsets = [0, 0, 0], sizes = [1, 1, 256], strides = [1, 1, 1]} : vector<1x1x358xf32> to vector<1x1x256xf32>
    %76 = vector.broadcast %74 : f32 to vector<1x1x256xf32>
    %77 = arith.mulf %76, %75 : vector<1x1x256xf32>
    %78 = arith.addf %73, %77 : vector<1x1x256xf32>
    %c7 = arith.constant 7 : index
    %79 = memref.load %arg6[%c7] : memref<98xf32, #tpu.memory_space<smem>>
    %80 = vector.extract_strided_slice %64 {offsets = [0, 0, 16], sizes = [1, 1, 256], strides = [1, 1, 1]} : vector<1x1x358xf32> to vector<1x1x256xf32>
    %81 = vector.broadcast %79 : f32 to vector<1x1x256xf32>
    %82 = arith.mulf %81, %80 : vector<1x1x256xf32>
    %c56 = arith.constant 56 : index
    %83 = memref.load %arg6[%c56] : memref<98xf32, #tpu.memory_space<smem>>
    %84 = vector.extract_strided_slice %65 {offsets = [0, 0, 16], sizes = [1, 1, 256], strides = [1, 1, 1]} : vector<1x1x358xf32> to vector<1x1x256xf32>
    %85 = vector.broadcast %83 : f32 to vector<1x1x256xf32>
    %86 = arith.mulf %85, %84 : vector<1x1x256xf32>
    %87 = arith.addf %82, %86 : vector<1x1x256xf32>
    %88 = arith.addf %78, %87 : vector<1x1x256xf32>
    %c14 = arith.constant 14 : index
    %89 = memref.load %arg6[%c14] : memref<98xf32, #tpu.memory_space<smem>>
    %90 = vector.extract_strided_slice %64 {offsets = [0, 0, 32], sizes = [1, 1, 256], strides = [1, 1, 1]} : vector<1x1x358xf32> to vector<1x1x256xf32>
    %91 = vector.broadcast %89 : f32 to vector<1x1x256xf32>
    %92 = arith.mulf %91, %90 : vector<1x1x256xf32>
    %c63 = arith.constant 63 : index
    %93 = memref.load %arg6[%c63] : memref<98xf32, #tpu.memory_space<smem>>
    %94 = vector.extract_strided_slice %65 {offsets = [0, 0, 32], sizes = [1, 1, 256], strides = [1, 1, 1]} : vector<1x1x358xf32> to vector<1x1x256xf32>
    %95 = vector.broadcast %93 : f32 to vector<1x1x256xf32>
    %96 = arith.mulf %95, %94 : vector<1x1x256xf32>
    %97 = arith.addf %92, %96 : vector<1x1x256xf32>
    %98 = arith.addf %88, %97 : vector<1x1x256xf32>
    %c21 = arith.constant 21 : index
    %99 = memref.load %arg6[%c21] : memref<98xf32, #tpu.memory_space<smem>>
    %100 = vector.extract_strided_slice %64 {offsets = [0, 0, 48], sizes = [1, 1, 256], strides = [1, 1, 1]} : vector<1x1x358xf32> to vector<1x1x256xf32>
    %101 = vector.broadcast %99 : f32 to vector<1x1x256xf32>
    %102 = arith.mulf %101, %100 : vector<1x1x256xf32>
    %c70 = arith.constant 70 : index
    %103 = memref.load %arg6[%c70] : memref<98xf32, #tpu.memory_space<smem>>
    %104 = vector.extract_strided_slice %65 {offsets = [0, 0, 48], sizes = [1, 1, 256], strides = [1, 1, 1]} : vector<1x1x358xf32> to vector<1x1x256xf32>
    %105 = vector.broadcast %103 : f32 to vector<1x1x256xf32>
    %106 = arith.mulf %105, %104 : vector<1x1x256xf32>
    %107 = arith.addf %102, %106 : vector<1x1x256xf32>
    %108 = arith.addf %98, %107 : vector<1x1x256xf32>
    %c28 = arith.constant 28 : index
    %109 = memref.load %arg6[%c28] : memref<98xf32, #tpu.memory_space<smem>>
    %110 = vector.extract_strided_slice %64 {offsets = [0, 0, 64], sizes = [1, 1, 256], strides = [1, 1, 1]} : vector<1x1x358xf32> to vector<1x1x256xf32>
    %111 = vector.broadcast %109 : f32 to vector<1x1x256xf32>
    %112 = arith.mulf %111, %110 : vector<1x1x256xf32>
    %c77 = arith.constant 77 : index
    %113 = memref.load %arg6[%c77] : memref<98xf32, #tpu.memory_space<smem>>
    %114 = vector.extract_strided_slice %65 {offsets = [0, 0, 64], sizes = [1, 1, 256], strides = [1, 1, 1]} : vector<1x1x358xf32> to vector<1x1x256xf32>
    %115 = vector.broadcast %113 : f32 to vector<1x1x256xf32>
    %116 = arith.mulf %115, %114 : vector<1x1x256xf32>
    %117 = arith.addf %112, %116 : vector<1x1x256xf32>
    %118 = arith.addf %108, %117 : vector<1x1x256xf32>
    %c35 = arith.constant 35 : index
    %119 = memref.load %arg6[%c35] : memref<98xf32, #tpu.memory_space<smem>>
    %120 = vector.extract_strided_slice %64 {offsets = [0, 0, 80], sizes = [1, 1, 256], strides = [1, 1, 1]} : vector<1x1x358xf32> to vector<1x1x256xf32>
    %121 = vector.broadcast %119 : f32 to vector<1x1x256xf32>
    %122 = arith.mulf %121, %120 : vector<1x1x256xf32>
    %c84 = arith.constant 84 : index
    %123 = memref.load %arg6[%c84] : memref<98xf32, #tpu.memory_space<smem>>
    %124 = vector.extract_strided_slice %65 {offsets = [0, 0, 80], sizes = [1, 1, 256], strides = [1, 1, 1]} : vector<1x1x358xf32> to vector<1x1x256xf32>
    %125 = vector.broadcast %123 : f32 to vector<1x1x256xf32>
    %126 = arith.mulf %125, %124 : vector<1x1x256xf32>
    %127 = arith.addf %122, %126 : vector<1x1x256xf32>
    %128 = arith.addf %118, %127 : vector<1x1x256xf32>
    %c42 = arith.constant 42 : index
    %129 = memref.load %arg6[%c42] : memref<98xf32, #tpu.memory_space<smem>>
    %130 = vector.extract_strided_slice %64 {offsets = [0, 0, 96], sizes = [1, 1, 256], strides = [1, 1, 1]} : vector<1x1x358xf32> to vector<1x1x256xf32>
    %131 = vector.broadcast %129 : f32 to vector<1x1x256xf32>
    %132 = arith.mulf %131, %130 : vector<1x1x256xf32>
    %c91 = arith.constant 91 : index
    %133 = memref.load %arg6[%c91] : memref<98xf32, #tpu.memory_space<smem>>
    %134 = vector.extract_strided_slice %65 {offsets = [0, 0, 96], sizes = [1, 1, 256], strides = [1, 1, 1]} : vector<1x1x358xf32> to vector<1x1x256xf32>
    %135 = vector.broadcast %133 : f32 to vector<1x1x256xf32>
    %136 = arith.mulf %135, %134 : vector<1x1x256xf32>
    %137 = arith.addf %132, %136 : vector<1x1x256xf32>
    %138 = arith.addf %128, %137 : vector<1x1x256xf32>
    %c3_i32 = arith.constant 3 : i32
    %139 = vector.broadcast %c3_i32 : i32 to vector<1x256xi32>
    %140 = arith.cmpi sge, %68, %139 : vector<1x256xi32>
    %c19_i32 = arith.constant 19 : i32
    %141 = vector.broadcast %c19_i32 : i32 to vector<1x256xi32>
    %142 = arith.cmpi slt, %68, %141 : vector<1x256xi32>
    %143 = arith.andi %140, %142 : vector<1x256xi1>
    %cst_27 = arith.constant 0.000000e+00 : f32
    %144 = vector.shape_cast %143 : vector<1x256xi1> to vector<1x1x256xi1>
    %145 = vector.broadcast %cst_27 : f32 to vector<1x1x256xf32>
    %146 = arith.select %144, %138, %145 : vector<1x1x256xi1>, vector<1x1x256xf32>
    %147 = arith.addf %69, %146 : vector<1x1x256xf32>
    %c1_28 = arith.constant 1 : index
    %148 = memref.load %arg6[%c1_28] : memref<98xf32, #tpu.memory_space<smem>>
    %149 = vector.extract_strided_slice %64 {offsets = [0, 0, 1], sizes = [1, 1, 256], strides = [1, 1, 1]} : vector<1x1x358xf32> to vector<1x1x256xf32>
    %150 = vector.broadcast %148 : f32 to vector<1x1x256xf32>
    %151 = arith.mulf %150, %149 : vector<1x1x256xf32>
    %c50 = arith.constant 50 : index
    %152 = memref.load %arg6[%c50] : memref<98xf32, #tpu.memory_space<smem>>
    %153 = vector.extract_strided_slice %65 {offsets = [0, 0, 1], sizes = [1, 1, 256], strides = [1, 1, 1]} : vector<1x1x358xf32> to vector<1x1x256xf32>
    %154 = vector.broadcast %152 : f32 to vector<1x1x256xf32>
    %155 = arith.mulf %154, %153 : vector<1x1x256xf32>
    %156 = arith.addf %151, %155 : vector<1x1x256xf32>
    %c8 = arith.constant 8 : index
    %157 = memref.load %arg6[%c8] : memref<98xf32, #tpu.memory_space<smem>>
    %158 = vector.extract_strided_slice %64 {offsets = [0, 0, 17], sizes = [1, 1, 256], strides = [1, 1, 1]} : vector<1x1x358xf32> to vector<1x1x256xf32>
    %159 = vector.broadcast %157 : f32 to vector<1x1x256xf32>
    %160 = arith.mulf %159, %158 : vector<1x1x256xf32>
    %c57 = arith.constant 57 : index
    %161 = memref.load %arg6[%c57] : memref<98xf32, #tpu.memory_space<smem>>
    %162 = vector.extract_strided_slice %65 {offsets = [0, 0, 17], sizes = [1, 1, 256], strides = [1, 1, 1]} : vector<1x1x358xf32> to vector<1x1x256xf32>
    %163 = vector.broadcast %161 : f32 to vector<1x1x256xf32>
    %164 = arith.mulf %163, %162 : vector<1x1x256xf32>
    %165 = arith.addf %160, %164 : vector<1x1x256xf32>
    %166 = arith.addf %156, %165 : vector<1x1x256xf32>
    %c15 = arith.constant 15 : index
    %167 = memref.load %arg6[%c15] : memref<98xf32, #tpu.memory_space<smem>>
    %168 = vector.extract_strided_slice %64 {offsets = [0, 0, 33], sizes = [1, 1, 256], strides = [1, 1, 1]} : vector<1x1x358xf32> to vector<1x1x256xf32>
    %169 = vector.broadcast %167 : f32 to vector<1x1x256xf32>
    %170 = arith.mulf %169, %168 : vector<1x1x256xf32>
    %c64 = arith.constant 64 : index
    %171 = memref.load %arg6[%c64] : memref<98xf32, #tpu.memory_space<smem>>
    %172 = vector.extract_strided_slice %65 {offsets = [0, 0, 33], sizes = [1, 1, 256], strides = [1, 1, 1]} : vector<1x1x358xf32> to vector<1x1x256xf32>
    %173 = vector.broadcast %171 : f32 to vector<1x1x256xf32>
    %174 = arith.mulf %173, %172 : vector<1x1x256xf32>
    %175 = arith.addf %170, %174 : vector<1x1x256xf32>
    %176 = arith.addf %166, %175 : vector<1x1x256xf32>
    %c22 = arith.constant 22 : index
    %177 = memref.load %arg6[%c22] : memref<98xf32, #tpu.memory_space<smem>>
    %178 = vector.extract_strided_slice %64 {offsets = [0, 0, 49], sizes = [1, 1, 256], strides = [1, 1, 1]} : vector<1x1x358xf32> to vector<1x1x256xf32>
    %179 = vector.broadcast %177 : f32 to vector<1x1x256xf32>
    %180 = arith.mulf %179, %178 : vector<1x1x256xf32>
    %c71 = arith.constant 71 : index
    %181 = memref.load %arg6[%c71] : memref<98xf32, #tpu.memory_space<smem>>
    %182 = vector.extract_strided_slice %65 {offsets = [0, 0, 49], sizes = [1, 1, 256], strides = [1, 1, 1]} : vector<1x1x358xf32> to vector<1x1x256xf32>
    %183 = vector.broadcast %181 : f32 to vector<1x1x256xf32>
    %184 = arith.mulf %183, %182 : vector<1x1x256xf32>
    %185 = arith.addf %180, %184 : vector<1x1x256xf32>
    %186 = arith.addf %176, %185 : vector<1x1x256xf32>
    %c29 = arith.constant 29 : index
    %187 = memref.load %arg6[%c29] : memref<98xf32, #tpu.memory_space<smem>>
    %188 = vector.extract_strided_slice %64 {offsets = [0, 0, 65], sizes = [1, 1, 256], strides = [1, 1, 1]} : vector<1x1x358xf32> to vector<1x1x256xf32>
    %189 = vector.broadcast %187 : f32 to vector<1x1x256xf32>
    %190 = arith.mulf %189, %188 : vector<1x1x256xf32>
    %c78 = arith.constant 78 : index
    %191 = memref.load %arg6[%c78] : memref<98xf32, #tpu.memory_space<smem>>
    %192 = vector.extract_strided_slice %65 {offsets = [0, 0, 65], sizes = [1, 1, 256], strides = [1, 1, 1]} : vector<1x1x358xf32> to vector<1x1x256xf32>
    %193 = vector.broadcast %191 : f32 to vector<1x1x256xf32>
    %194 = arith.mulf %193, %192 : vector<1x1x256xf32>
    %195 = arith.addf %190, %194 : vector<1x1x256xf32>
    %196 = arith.addf %186, %195 : vector<1x1x256xf32>
    %c36 = arith.constant 36 : index
    %197 = memref.load %arg6[%c36] : memref<98xf32, #tpu.memory_space<smem>>
    %198 = vector.extract_strided_slice %64 {offsets = [0, 0, 81], sizes = [1, 1, 256], strides = [1, 1, 1]} : vector<1x1x358xf32> to vector<1x1x256xf32>
    %199 = vector.broadcast %197 : f32 to vector<1x1x256xf32>
    %200 = arith.mulf %199, %198 : vector<1x1x256xf32>
    %c85 = arith.constant 85 : index
    %201 = memref.load %arg6[%c85] : memref<98xf32, #tpu.memory_space<smem>>
    %202 = vector.extract_strided_slice %65 {offsets = [0, 0, 81], sizes = [1, 1, 256], strides = [1, 1, 1]} : vector<1x1x358xf32> to vector<1x1x256xf32>
    %203 = vector.broadcast %201 : f32 to vector<1x1x256xf32>
    %204 = arith.mulf %203, %202 : vector<1x1x256xf32>
    %205 = arith.addf %200, %204 : vector<1x1x256xf32>
    %206 = arith.addf %196, %205 : vector<1x1x256xf32>
    %c43 = arith.constant 43 : index
    %207 = memref.load %arg6[%c43] : memref<98xf32, #tpu.memory_space<smem>>
    %208 = vector.extract_strided_slice %64 {offsets = [0, 0, 97], sizes = [1, 1, 256], strides = [1, 1, 1]} : vector<1x1x358xf32> to vector<1x1x256xf32>
    %209 = vector.broadcast %207 : f32 to vector<1x1x256xf32>
    %210 = arith.mulf %209, %208 : vector<1x1x256xf32>
    %c92 = arith.constant 92 : index
    %211 = memref.load %arg6[%c92] : memref<98xf32, #tpu.memory_space<smem>>
    %212 = vector.extract_strided_slice %65 {offsets = [0, 0, 97], sizes = [1, 1, 256], strides = [1, 1, 1]} : vector<1x1x358xf32> to vector<1x1x256xf32>
    %213 = vector.broadcast %211 : f32 to vector<1x1x256xf32>
    %214 = arith.mulf %213, %212 : vector<1x1x256xf32>
    %215 = arith.addf %210, %214 : vector<1x1x256xf32>
    %216 = arith.addf %206, %215 : vector<1x1x256xf32>
    %c2_i32 = arith.constant 2 : i32
    %217 = vector.broadcast %c2_i32 : i32 to vector<1x256xi32>
    %218 = arith.cmpi sge, %68, %217 : vector<1x256xi32>
    %c18_i32 = arith.constant 18 : i32
    %219 = vector.broadcast %c18_i32 : i32 to vector<1x256xi32>
    %220 = arith.cmpi slt, %68, %219 : vector<1x256xi32>
    %221 = arith.andi %218, %220 : vector<1x256xi1>
    %cst_29 = arith.constant 0.000000e+00 : f32
    %222 = vector.shape_cast %221 : vector<1x256xi1> to vector<1x1x256xi1>
    %223 = vector.broadcast %cst_29 : f32 to vector<1x1x256xf32>
    %224 = arith.select %222, %216, %223 : vector<1x1x256xi1>, vector<1x1x256xf32>
    %225 = arith.addf %147, %224 : vector<1x1x256xf32>
    %c2 = arith.constant 2 : index
    %226 = memref.load %arg6[%c2] : memref<98xf32, #tpu.memory_space<smem>>
    %227 = vector.extract_strided_slice %64 {offsets = [0, 0, 2], sizes = [1, 1, 256], strides = [1, 1, 1]} : vector<1x1x358xf32> to vector<1x1x256xf32>
    %228 = vector.broadcast %226 : f32 to vector<1x1x256xf32>
    %229 = arith.mulf %228, %227 : vector<1x1x256xf32>
    %c51 = arith.constant 51 : index
    %230 = memref.load %arg6[%c51] : memref<98xf32, #tpu.memory_space<smem>>
    %231 = vector.extract_strided_slice %65 {offsets = [0, 0, 2], sizes = [1, 1, 256], strides = [1, 1, 1]} : vector<1x1x358xf32> to vector<1x1x256xf32>
    %232 = vector.broadcast %230 : f32 to vector<1x1x256xf32>
    %233 = arith.mulf %232, %231 : vector<1x1x256xf32>
    %234 = arith.addf %229, %233 : vector<1x1x256xf32>
    %c9 = arith.constant 9 : index
    %235 = memref.load %arg6[%c9] : memref<98xf32, #tpu.memory_space<smem>>
    %236 = vector.extract_strided_slice %64 {offsets = [0, 0, 18], sizes = [1, 1, 256], strides = [1, 1, 1]} : vector<1x1x358xf32> to vector<1x1x256xf32>
    %237 = vector.broadcast %235 : f32 to vector<1x1x256xf32>
    %238 = arith.mulf %237, %236 : vector<1x1x256xf32>
    %c58 = arith.constant 58 : index
    %239 = memref.load %arg6[%c58] : memref<98xf32, #tpu.memory_space<smem>>
    %240 = vector.extract_strided_slice %65 {offsets = [0, 0, 18], sizes = [1, 1, 256], strides = [1, 1, 1]} : vector<1x1x358xf32> to vector<1x1x256xf32>
    %241 = vector.broadcast %239 : f32 to vector<1x1x256xf32>
    %242 = arith.mulf %241, %240 : vector<1x1x256xf32>
    %243 = arith.addf %238, %242 : vector<1x1x256xf32>
    %244 = arith.addf %234, %243 : vector<1x1x256xf32>
    %c16 = arith.constant 16 : index
    %245 = memref.load %arg6[%c16] : memref<98xf32, #tpu.memory_space<smem>>
    %246 = vector.extract_strided_slice %64 {offsets = [0, 0, 34], sizes = [1, 1, 256], strides = [1, 1, 1]} : vector<1x1x358xf32> to vector<1x1x256xf32>
    %247 = vector.broadcast %245 : f32 to vector<1x1x256xf32>
    %248 = arith.mulf %247, %246 : vector<1x1x256xf32>
    %c65 = arith.constant 65 : index
    %249 = memref.load %arg6[%c65] : memref<98xf32, #tpu.memory_space<smem>>
    %250 = vector.extract_strided_slice %65 {offsets = [0, 0, 34], sizes = [1, 1, 256], strides = [1, 1, 1]} : vector<1x1x358xf32> to vector<1x1x256xf32>
    %251 = vector.broadcast %249 : f32 to vector<1x1x256xf32>
    %252 = arith.mulf %251, %250 : vector<1x1x256xf32>
    %253 = arith.addf %248, %252 : vector<1x1x256xf32>
    %254 = arith.addf %244, %253 : vector<1x1x256xf32>
    %c23 = arith.constant 23 : index
    %255 = memref.load %arg6[%c23] : memref<98xf32, #tpu.memory_space<smem>>
    %256 = vector.extract_strided_slice %64 {offsets = [0, 0, 50], sizes = [1, 1, 256], strides = [1, 1, 1]} : vector<1x1x358xf32> to vector<1x1x256xf32>
    %257 = vector.broadcast %255 : f32 to vector<1x1x256xf32>
    %258 = arith.mulf %257, %256 : vector<1x1x256xf32>
    %c72 = arith.constant 72 : index
    %259 = memref.load %arg6[%c72] : memref<98xf32, #tpu.memory_space<smem>>
    %260 = vector.extract_strided_slice %65 {offsets = [0, 0, 50], sizes = [1, 1, 256], strides = [1, 1, 1]} : vector<1x1x358xf32> to vector<1x1x256xf32>
    %261 = vector.broadcast %259 : f32 to vector<1x1x256xf32>
    %262 = arith.mulf %261, %260 : vector<1x1x256xf32>
    %263 = arith.addf %258, %262 : vector<1x1x256xf32>
    %264 = arith.addf %254, %263 : vector<1x1x256xf32>
    %c30 = arith.constant 30 : index
    %265 = memref.load %arg6[%c30] : memref<98xf32, #tpu.memory_space<smem>>
    %266 = vector.extract_strided_slice %64 {offsets = [0, 0, 66], sizes = [1, 1, 256], strides = [1, 1, 1]} : vector<1x1x358xf32> to vector<1x1x256xf32>
    %267 = vector.broadcast %265 : f32 to vector<1x1x256xf32>
    %268 = arith.mulf %267, %266 : vector<1x1x256xf32>
    %c79 = arith.constant 79 : index
    %269 = memref.load %arg6[%c79] : memref<98xf32, #tpu.memory_space<smem>>
    %270 = vector.extract_strided_slice %65 {offsets = [0, 0, 66], sizes = [1, 1, 256], strides = [1, 1, 1]} : vector<1x1x358xf32> to vector<1x1x256xf32>
    %271 = vector.broadcast %269 : f32 to vector<1x1x256xf32>
    %272 = arith.mulf %271, %270 : vector<1x1x256xf32>
    %273 = arith.addf %268, %272 : vector<1x1x256xf32>
    %274 = arith.addf %264, %273 : vector<1x1x256xf32>
    %c37 = arith.constant 37 : index
    %275 = memref.load %arg6[%c37] : memref<98xf32, #tpu.memory_space<smem>>
    %276 = vector.extract_strided_slice %64 {offsets = [0, 0, 82], sizes = [1, 1, 256], strides = [1, 1, 1]} : vector<1x1x358xf32> to vector<1x1x256xf32>
    %277 = vector.broadcast %275 : f32 to vector<1x1x256xf32>
    %278 = arith.mulf %277, %276 : vector<1x1x256xf32>
    %c86 = arith.constant 86 : index
    %279 = memref.load %arg6[%c86] : memref<98xf32, #tpu.memory_space<smem>>
    %280 = vector.extract_strided_slice %65 {offsets = [0, 0, 82], sizes = [1, 1, 256], strides = [1, 1, 1]} : vector<1x1x358xf32> to vector<1x1x256xf32>
    %281 = vector.broadcast %279 : f32 to vector<1x1x256xf32>
    %282 = arith.mulf %281, %280 : vector<1x1x256xf32>
    %283 = arith.addf %278, %282 : vector<1x1x256xf32>
    %284 = arith.addf %274, %283 : vector<1x1x256xf32>
    %c44 = arith.constant 44 : index
    %285 = memref.load %arg6[%c44] : memref<98xf32, #tpu.memory_space<smem>>
    %286 = vector.extract_strided_slice %64 {offsets = [0, 0, 98], sizes = [1, 1, 256], strides = [1, 1, 1]} : vector<1x1x358xf32> to vector<1x1x256xf32>
    %287 = vector.broadcast %285 : f32 to vector<1x1x256xf32>
    %288 = arith.mulf %287, %286 : vector<1x1x256xf32>
    %c93 = arith.constant 93 : index
    %289 = memref.load %arg6[%c93] : memref<98xf32, #tpu.memory_space<smem>>
    %290 = vector.extract_strided_slice %65 {offsets = [0, 0, 98], sizes = [1, 1, 256], strides = [1, 1, 1]} : vector<1x1x358xf32> to vector<1x1x256xf32>
    %291 = vector.broadcast %289 : f32 to vector<1x1x256xf32>
    %292 = arith.mulf %291, %290 : vector<1x1x256xf32>
    %293 = arith.addf %288, %292 : vector<1x1x256xf32>
    %294 = arith.addf %284, %293 : vector<1x1x256xf32>
    %c1_i32 = arith.constant 1 : i32
    %295 = vector.broadcast %c1_i32 : i32 to vector<1x256xi32>
    %296 = arith.cmpi sge, %68, %295 : vector<1x256xi32>
    %c17_i32 = arith.constant 17 : i32
    %297 = vector.broadcast %c17_i32 : i32 to vector<1x256xi32>
    %298 = arith.cmpi slt, %68, %297 : vector<1x256xi32>
    %299 = arith.andi %296, %298 : vector<1x256xi1>
    %cst_30 = arith.constant 0.000000e+00 : f32
    %300 = vector.shape_cast %299 : vector<1x256xi1> to vector<1x1x256xi1>
    %301 = vector.broadcast %cst_30 : f32 to vector<1x1x256xf32>
    %302 = arith.select %300, %294, %301 : vector<1x1x256xi1>, vector<1x1x256xf32>
    %303 = arith.addf %225, %302 : vector<1x1x256xf32>
    %c3 = arith.constant 3 : index
    %304 = memref.load %arg6[%c3] : memref<98xf32, #tpu.memory_space<smem>>
    %305 = vector.extract_strided_slice %64 {offsets = [0, 0, 3], sizes = [1, 1, 256], strides = [1, 1, 1]} : vector<1x1x358xf32> to vector<1x1x256xf32>
    %306 = vector.broadcast %304 : f32 to vector<1x1x256xf32>
    %307 = arith.mulf %306, %305 : vector<1x1x256xf32>
    %c52 = arith.constant 52 : index
    %308 = memref.load %arg6[%c52] : memref<98xf32, #tpu.memory_space<smem>>
    %309 = vector.extract_strided_slice %65 {offsets = [0, 0, 3], sizes = [1, 1, 256], strides = [1, 1, 1]} : vector<1x1x358xf32> to vector<1x1x256xf32>
    %310 = vector.broadcast %308 : f32 to vector<1x1x256xf32>
    %311 = arith.mulf %310, %309 : vector<1x1x256xf32>
    %312 = arith.addf %307, %311 : vector<1x1x256xf32>
    %c10 = arith.constant 10 : index
    %313 = memref.load %arg6[%c10] : memref<98xf32, #tpu.memory_space<smem>>
    %314 = vector.extract_strided_slice %64 {offsets = [0, 0, 19], sizes = [1, 1, 256], strides = [1, 1, 1]} : vector<1x1x358xf32> to vector<1x1x256xf32>
    %315 = vector.broadcast %313 : f32 to vector<1x1x256xf32>
    %316 = arith.mulf %315, %314 : vector<1x1x256xf32>
    %c59 = arith.constant 59 : index
    %317 = memref.load %arg6[%c59] : memref<98xf32, #tpu.memory_space<smem>>
    %318 = vector.extract_strided_slice %65 {offsets = [0, 0, 19], sizes = [1, 1, 256], strides = [1, 1, 1]} : vector<1x1x358xf32> to vector<1x1x256xf32>
    %319 = vector.broadcast %317 : f32 to vector<1x1x256xf32>
    %320 = arith.mulf %319, %318 : vector<1x1x256xf32>
    %321 = arith.addf %316, %320 : vector<1x1x256xf32>
    %322 = arith.addf %312, %321 : vector<1x1x256xf32>
    %c17 = arith.constant 17 : index
    %323 = memref.load %arg6[%c17] : memref<98xf32, #tpu.memory_space<smem>>
    %324 = vector.extract_strided_slice %64 {offsets = [0, 0, 35], sizes = [1, 1, 256], strides = [1, 1, 1]} : vector<1x1x358xf32> to vector<1x1x256xf32>
    %325 = vector.broadcast %323 : f32 to vector<1x1x256xf32>
    %326 = arith.mulf %325, %324 : vector<1x1x256xf32>
    %c66 = arith.constant 66 : index
    %327 = memref.load %arg6[%c66] : memref<98xf32, #tpu.memory_space<smem>>
    %328 = vector.extract_strided_slice %65 {offsets = [0, 0, 35], sizes = [1, 1, 256], strides = [1, 1, 1]} : vector<1x1x358xf32> to vector<1x1x256xf32>
    %329 = vector.broadcast %327 : f32 to vector<1x1x256xf32>
    %330 = arith.mulf %329, %328 : vector<1x1x256xf32>
    %331 = arith.addf %326, %330 : vector<1x1x256xf32>
    %332 = arith.addf %322, %331 : vector<1x1x256xf32>
    %c24 = arith.constant 24 : index
    %333 = memref.load %arg6[%c24] : memref<98xf32, #tpu.memory_space<smem>>
    %334 = vector.extract_strided_slice %64 {offsets = [0, 0, 51], sizes = [1, 1, 256], strides = [1, 1, 1]} : vector<1x1x358xf32> to vector<1x1x256xf32>
    %335 = vector.broadcast %333 : f32 to vector<1x1x256xf32>
    %336 = arith.mulf %335, %334 : vector<1x1x256xf32>
    %c73 = arith.constant 73 : index
    %337 = memref.load %arg6[%c73] : memref<98xf32, #tpu.memory_space<smem>>
    %338 = vector.extract_strided_slice %65 {offsets = [0, 0, 51], sizes = [1, 1, 256], strides = [1, 1, 1]} : vector<1x1x358xf32> to vector<1x1x256xf32>
    %339 = vector.broadcast %337 : f32 to vector<1x1x256xf32>
    %340 = arith.mulf %339, %338 : vector<1x1x256xf32>
    %341 = arith.addf %336, %340 : vector<1x1x256xf32>
    %342 = arith.addf %332, %341 : vector<1x1x256xf32>
    %c31 = arith.constant 31 : index
    %343 = memref.load %arg6[%c31] : memref<98xf32, #tpu.memory_space<smem>>
    %344 = vector.extract_strided_slice %64 {offsets = [0, 0, 67], sizes = [1, 1, 256], strides = [1, 1, 1]} : vector<1x1x358xf32> to vector<1x1x256xf32>
    %345 = vector.broadcast %343 : f32 to vector<1x1x256xf32>
    %346 = arith.mulf %345, %344 : vector<1x1x256xf32>
    %c80 = arith.constant 80 : index
    %347 = memref.load %arg6[%c80] : memref<98xf32, #tpu.memory_space<smem>>
    %348 = vector.extract_strided_slice %65 {offsets = [0, 0, 67], sizes = [1, 1, 256], strides = [1, 1, 1]} : vector<1x1x358xf32> to vector<1x1x256xf32>
    %349 = vector.broadcast %347 : f32 to vector<1x1x256xf32>
    %350 = arith.mulf %349, %348 : vector<1x1x256xf32>
    %351 = arith.addf %346, %350 : vector<1x1x256xf32>
    %352 = arith.addf %342, %351 : vector<1x1x256xf32>
    %c38 = arith.constant 38 : index
    %353 = memref.load %arg6[%c38] : memref<98xf32, #tpu.memory_space<smem>>
    %354 = vector.extract_strided_slice %64 {offsets = [0, 0, 83], sizes = [1, 1, 256], strides = [1, 1, 1]} : vector<1x1x358xf32> to vector<1x1x256xf32>
    %355 = vector.broadcast %353 : f32 to vector<1x1x256xf32>
    %356 = arith.mulf %355, %354 : vector<1x1x256xf32>
    %c87 = arith.constant 87 : index
    %357 = memref.load %arg6[%c87] : memref<98xf32, #tpu.memory_space<smem>>
    %358 = vector.extract_strided_slice %65 {offsets = [0, 0, 83], sizes = [1, 1, 256], strides = [1, 1, 1]} : vector<1x1x358xf32> to vector<1x1x256xf32>
    %359 = vector.broadcast %357 : f32 to vector<1x1x256xf32>
    %360 = arith.mulf %359, %358 : vector<1x1x256xf32>
    %361 = arith.addf %356, %360 : vector<1x1x256xf32>
    %362 = arith.addf %352, %361 : vector<1x1x256xf32>
    %c45 = arith.constant 45 : index
    %363 = memref.load %arg6[%c45] : memref<98xf32, #tpu.memory_space<smem>>
    %364 = vector.extract_strided_slice %64 {offsets = [0, 0, 99], sizes = [1, 1, 256], strides = [1, 1, 1]} : vector<1x1x358xf32> to vector<1x1x256xf32>
    %365 = vector.broadcast %363 : f32 to vector<1x1x256xf32>
    %366 = arith.mulf %365, %364 : vector<1x1x256xf32>
    %c94 = arith.constant 94 : index
    %367 = memref.load %arg6[%c94] : memref<98xf32, #tpu.memory_space<smem>>
    %368 = vector.extract_strided_slice %65 {offsets = [0, 0, 99], sizes = [1, 1, 256], strides = [1, 1, 1]} : vector<1x1x358xf32> to vector<1x1x256xf32>
    %369 = vector.broadcast %367 : f32 to vector<1x1x256xf32>
    %370 = arith.mulf %369, %368 : vector<1x1x256xf32>
    %371 = arith.addf %366, %370 : vector<1x1x256xf32>
    %372 = arith.addf %362, %371 : vector<1x1x256xf32>
    %373 = arith.addf %303, %372 : vector<1x1x256xf32>
    %c4 = arith.constant 4 : index
    %374 = memref.load %arg6[%c4] : memref<98xf32, #tpu.memory_space<smem>>
    %375 = vector.extract_strided_slice %64 {offsets = [0, 0, 4], sizes = [1, 1, 256], strides = [1, 1, 1]} : vector<1x1x358xf32> to vector<1x1x256xf32>
    %376 = vector.broadcast %374 : f32 to vector<1x1x256xf32>
    %377 = arith.mulf %376, %375 : vector<1x1x256xf32>
    %c53 = arith.constant 53 : index
    %378 = memref.load %arg6[%c53] : memref<98xf32, #tpu.memory_space<smem>>
    %379 = vector.extract_strided_slice %65 {offsets = [0, 0, 4], sizes = [1, 1, 256], strides = [1, 1, 1]} : vector<1x1x358xf32> to vector<1x1x256xf32>
    %380 = vector.broadcast %378 : f32 to vector<1x1x256xf32>
    %381 = arith.mulf %380, %379 : vector<1x1x256xf32>
    %382 = arith.addf %377, %381 : vector<1x1x256xf32>
    %c11 = arith.constant 11 : index
    %383 = memref.load %arg6[%c11] : memref<98xf32, #tpu.memory_space<smem>>
    %384 = vector.extract_strided_slice %64 {offsets = [0, 0, 20], sizes = [1, 1, 256], strides = [1, 1, 1]} : vector<1x1x358xf32> to vector<1x1x256xf32>
    %385 = vector.broadcast %383 : f32 to vector<1x1x256xf32>
    %386 = arith.mulf %385, %384 : vector<1x1x256xf32>
    %c60 = arith.constant 60 : index
    %387 = memref.load %arg6[%c60] : memref<98xf32, #tpu.memory_space<smem>>
    %388 = vector.extract_strided_slice %65 {offsets = [0, 0, 20], sizes = [1, 1, 256], strides = [1, 1, 1]} : vector<1x1x358xf32> to vector<1x1x256xf32>
    %389 = vector.broadcast %387 : f32 to vector<1x1x256xf32>
    %390 = arith.mulf %389, %388 : vector<1x1x256xf32>
    %391 = arith.addf %386, %390 : vector<1x1x256xf32>
    %392 = arith.addf %382, %391 : vector<1x1x256xf32>
    %c18 = arith.constant 18 : index
    %393 = memref.load %arg6[%c18] : memref<98xf32, #tpu.memory_space<smem>>
    %394 = vector.extract_strided_slice %64 {offsets = [0, 0, 36], sizes = [1, 1, 256], strides = [1, 1, 1]} : vector<1x1x358xf32> to vector<1x1x256xf32>
    %395 = vector.broadcast %393 : f32 to vector<1x1x256xf32>
    %396 = arith.mulf %395, %394 : vector<1x1x256xf32>
    %c67 = arith.constant 67 : index
    %397 = memref.load %arg6[%c67] : memref<98xf32, #tpu.memory_space<smem>>
    %398 = vector.extract_strided_slice %65 {offsets = [0, 0, 36], sizes = [1, 1, 256], strides = [1, 1, 1]} : vector<1x1x358xf32> to vector<1x1x256xf32>
    %399 = vector.broadcast %397 : f32 to vector<1x1x256xf32>
    %400 = arith.mulf %399, %398 : vector<1x1x256xf32>
    %401 = arith.addf %396, %400 : vector<1x1x256xf32>
    %402 = arith.addf %392, %401 : vector<1x1x256xf32>
    %c25 = arith.constant 25 : index
    %403 = memref.load %arg6[%c25] : memref<98xf32, #tpu.memory_space<smem>>
    %404 = vector.extract_strided_slice %64 {offsets = [0, 0, 52], sizes = [1, 1, 256], strides = [1, 1, 1]} : vector<1x1x358xf32> to vector<1x1x256xf32>
    %405 = vector.broadcast %403 : f32 to vector<1x1x256xf32>
    %406 = arith.mulf %405, %404 : vector<1x1x256xf32>
    %c74 = arith.constant 74 : index
    %407 = memref.load %arg6[%c74] : memref<98xf32, #tpu.memory_space<smem>>
    %408 = vector.extract_strided_slice %65 {offsets = [0, 0, 52], sizes = [1, 1, 256], strides = [1, 1, 1]} : vector<1x1x358xf32> to vector<1x1x256xf32>
    %409 = vector.broadcast %407 : f32 to vector<1x1x256xf32>
    %410 = arith.mulf %409, %408 : vector<1x1x256xf32>
    %411 = arith.addf %406, %410 : vector<1x1x256xf32>
    %412 = arith.addf %402, %411 : vector<1x1x256xf32>
    %c32 = arith.constant 32 : index
    %413 = memref.load %arg6[%c32] : memref<98xf32, #tpu.memory_space<smem>>
    %414 = vector.extract_strided_slice %64 {offsets = [0, 0, 68], sizes = [1, 1, 256], strides = [1, 1, 1]} : vector<1x1x358xf32> to vector<1x1x256xf32>
    %415 = vector.broadcast %413 : f32 to vector<1x1x256xf32>
    %416 = arith.mulf %415, %414 : vector<1x1x256xf32>
    %c81 = arith.constant 81 : index
    %417 = memref.load %arg6[%c81] : memref<98xf32, #tpu.memory_space<smem>>
    %418 = vector.extract_strided_slice %65 {offsets = [0, 0, 68], sizes = [1, 1, 256], strides = [1, 1, 1]} : vector<1x1x358xf32> to vector<1x1x256xf32>
    %419 = vector.broadcast %417 : f32 to vector<1x1x256xf32>
    %420 = arith.mulf %419, %418 : vector<1x1x256xf32>
    %421 = arith.addf %416, %420 : vector<1x1x256xf32>
    %422 = arith.addf %412, %421 : vector<1x1x256xf32>
    %c39 = arith.constant 39 : index
    %423 = memref.load %arg6[%c39] : memref<98xf32, #tpu.memory_space<smem>>
    %424 = vector.extract_strided_slice %64 {offsets = [0, 0, 84], sizes = [1, 1, 256], strides = [1, 1, 1]} : vector<1x1x358xf32> to vector<1x1x256xf32>
    %425 = vector.broadcast %423 : f32 to vector<1x1x256xf32>
    %426 = arith.mulf %425, %424 : vector<1x1x256xf32>
    %c88 = arith.constant 88 : index
    %427 = memref.load %arg6[%c88] : memref<98xf32, #tpu.memory_space<smem>>
    %428 = vector.extract_strided_slice %65 {offsets = [0, 0, 84], sizes = [1, 1, 256], strides = [1, 1, 1]} : vector<1x1x358xf32> to vector<1x1x256xf32>
    %429 = vector.broadcast %427 : f32 to vector<1x1x256xf32>
    %430 = arith.mulf %429, %428 : vector<1x1x256xf32>
    %431 = arith.addf %426, %430 : vector<1x1x256xf32>
    %432 = arith.addf %422, %431 : vector<1x1x256xf32>
    %c46 = arith.constant 46 : index
    %433 = memref.load %arg6[%c46] : memref<98xf32, #tpu.memory_space<smem>>
    %434 = vector.extract_strided_slice %64 {offsets = [0, 0, 100], sizes = [1, 1, 256], strides = [1, 1, 1]} : vector<1x1x358xf32> to vector<1x1x256xf32>
    %435 = vector.broadcast %433 : f32 to vector<1x1x256xf32>
    %436 = arith.mulf %435, %434 : vector<1x1x256xf32>
    %c95 = arith.constant 95 : index
    %437 = memref.load %arg6[%c95] : memref<98xf32, #tpu.memory_space<smem>>
    %438 = vector.extract_strided_slice %65 {offsets = [0, 0, 100], sizes = [1, 1, 256], strides = [1, 1, 1]} : vector<1x1x358xf32> to vector<1x1x256xf32>
    %439 = vector.broadcast %437 : f32 to vector<1x1x256xf32>
    %440 = arith.mulf %439, %438 : vector<1x1x256xf32>
    %441 = arith.addf %436, %440 : vector<1x1x256xf32>
    %442 = arith.addf %432, %441 : vector<1x1x256xf32>
    %c-1_i32 = arith.constant -1 : i32
    %443 = vector.broadcast %c-1_i32 : i32 to vector<1x256xi32>
    %444 = arith.cmpi sge, %68, %443 : vector<1x256xi32>
    %c15_i32_31 = arith.constant 15 : i32
    %445 = vector.broadcast %c15_i32_31 : i32 to vector<1x256xi32>
    %446 = arith.cmpi slt, %68, %445 : vector<1x256xi32>
    %447 = arith.andi %444, %446 : vector<1x256xi1>
    %cst_32 = arith.constant 0.000000e+00 : f32
    %448 = vector.shape_cast %447 : vector<1x256xi1> to vector<1x1x256xi1>
    %449 = vector.broadcast %cst_32 : f32 to vector<1x1x256xf32>
    %450 = arith.select %448, %442, %449 : vector<1x1x256xi1>, vector<1x1x256xf32>
    %451 = arith.addf %373, %450 : vector<1x1x256xf32>
    %c5 = arith.constant 5 : index
    %452 = memref.load %arg6[%c5] : memref<98xf32, #tpu.memory_space<smem>>
    %453 = vector.extract_strided_slice %64 {offsets = [0, 0, 5], sizes = [1, 1, 256], strides = [1, 1, 1]} : vector<1x1x358xf32> to vector<1x1x256xf32>
    %454 = vector.broadcast %452 : f32 to vector<1x1x256xf32>
    %455 = arith.mulf %454, %453 : vector<1x1x256xf32>
    %c54 = arith.constant 54 : index
    %456 = memref.load %arg6[%c54] : memref<98xf32, #tpu.memory_space<smem>>
    %457 = vector.extract_strided_slice %65 {offsets = [0, 0, 5], sizes = [1, 1, 256], strides = [1, 1, 1]} : vector<1x1x358xf32> to vector<1x1x256xf32>
    %458 = vector.broadcast %456 : f32 to vector<1x1x256xf32>
    %459 = arith.mulf %458, %457 : vector<1x1x256xf32>
    %460 = arith.addf %455, %459 : vector<1x1x256xf32>
    %c12 = arith.constant 12 : index
    %461 = memref.load %arg6[%c12] : memref<98xf32, #tpu.memory_space<smem>>
    %462 = vector.extract_strided_slice %64 {offsets = [0, 0, 21], sizes = [1, 1, 256], strides = [1, 1, 1]} : vector<1x1x358xf32> to vector<1x1x256xf32>
    %463 = vector.broadcast %461 : f32 to vector<1x1x256xf32>
    %464 = arith.mulf %463, %462 : vector<1x1x256xf32>
    %c61 = arith.constant 61 : index
    %465 = memref.load %arg6[%c61] : memref<98xf32, #tpu.memory_space<smem>>
    %466 = vector.extract_strided_slice %65 {offsets = [0, 0, 21], sizes = [1, 1, 256], strides = [1, 1, 1]} : vector<1x1x358xf32> to vector<1x1x256xf32>
    %467 = vector.broadcast %465 : f32 to vector<1x1x256xf32>
    %468 = arith.mulf %467, %466 : vector<1x1x256xf32>
    %469 = arith.addf %464, %468 : vector<1x1x256xf32>
    %470 = arith.addf %460, %469 : vector<1x1x256xf32>
    %c19 = arith.constant 19 : index
    %471 = memref.load %arg6[%c19] : memref<98xf32, #tpu.memory_space<smem>>
    %472 = vector.extract_strided_slice %64 {offsets = [0, 0, 37], sizes = [1, 1, 256], strides = [1, 1, 1]} : vector<1x1x358xf32> to vector<1x1x256xf32>
    %473 = vector.broadcast %471 : f32 to vector<1x1x256xf32>
    %474 = arith.mulf %473, %472 : vector<1x1x256xf32>
    %c68 = arith.constant 68 : index
    %475 = memref.load %arg6[%c68] : memref<98xf32, #tpu.memory_space<smem>>
    %476 = vector.extract_strided_slice %65 {offsets = [0, 0, 37], sizes = [1, 1, 256], strides = [1, 1, 1]} : vector<1x1x358xf32> to vector<1x1x256xf32>
    %477 = vector.broadcast %475 : f32 to vector<1x1x256xf32>
    %478 = arith.mulf %477, %476 : vector<1x1x256xf32>
    %479 = arith.addf %474, %478 : vector<1x1x256xf32>
    %480 = arith.addf %470, %479 : vector<1x1x256xf32>
    %c26 = arith.constant 26 : index
    %481 = memref.load %arg6[%c26] : memref<98xf32, #tpu.memory_space<smem>>
    %482 = vector.extract_strided_slice %64 {offsets = [0, 0, 53], sizes = [1, 1, 256], strides = [1, 1, 1]} : vector<1x1x358xf32> to vector<1x1x256xf32>
    %483 = vector.broadcast %481 : f32 to vector<1x1x256xf32>
    %484 = arith.mulf %483, %482 : vector<1x1x256xf32>
    %c75 = arith.constant 75 : index
    %485 = memref.load %arg6[%c75] : memref<98xf32, #tpu.memory_space<smem>>
    %486 = vector.extract_strided_slice %65 {offsets = [0, 0, 53], sizes = [1, 1, 256], strides = [1, 1, 1]} : vector<1x1x358xf32> to vector<1x1x256xf32>
    %487 = vector.broadcast %485 : f32 to vector<1x1x256xf32>
    %488 = arith.mulf %487, %486 : vector<1x1x256xf32>
    %489 = arith.addf %484, %488 : vector<1x1x256xf32>
    %490 = arith.addf %480, %489 : vector<1x1x256xf32>
    %c33 = arith.constant 33 : index
    %491 = memref.load %arg6[%c33] : memref<98xf32, #tpu.memory_space<smem>>
    %492 = vector.extract_strided_slice %64 {offsets = [0, 0, 69], sizes = [1, 1, 256], strides = [1, 1, 1]} : vector<1x1x358xf32> to vector<1x1x256xf32>
    %493 = vector.broadcast %491 : f32 to vector<1x1x256xf32>
    %494 = arith.mulf %493, %492 : vector<1x1x256xf32>
    %c82 = arith.constant 82 : index
    %495 = memref.load %arg6[%c82] : memref<98xf32, #tpu.memory_space<smem>>
    %496 = vector.extract_strided_slice %65 {offsets = [0, 0, 69], sizes = [1, 1, 256], strides = [1, 1, 1]} : vector<1x1x358xf32> to vector<1x1x256xf32>
    %497 = vector.broadcast %495 : f32 to vector<1x1x256xf32>
    %498 = arith.mulf %497, %496 : vector<1x1x256xf32>
    %499 = arith.addf %494, %498 : vector<1x1x256xf32>
    %500 = arith.addf %490, %499 : vector<1x1x256xf32>
    %c40 = arith.constant 40 : index
    %501 = memref.load %arg6[%c40] : memref<98xf32, #tpu.memory_space<smem>>
    %502 = vector.extract_strided_slice %64 {offsets = [0, 0, 85], sizes = [1, 1, 256], strides = [1, 1, 1]} : vector<1x1x358xf32> to vector<1x1x256xf32>
    %503 = vector.broadcast %501 : f32 to vector<1x1x256xf32>
    %504 = arith.mulf %503, %502 : vector<1x1x256xf32>
    %c89 = arith.constant 89 : index
    %505 = memref.load %arg6[%c89] : memref<98xf32, #tpu.memory_space<smem>>
    %506 = vector.extract_strided_slice %65 {offsets = [0, 0, 85], sizes = [1, 1, 256], strides = [1, 1, 1]} : vector<1x1x358xf32> to vector<1x1x256xf32>
    %507 = vector.broadcast %505 : f32 to vector<1x1x256xf32>
    %508 = arith.mulf %507, %506 : vector<1x1x256xf32>
    %509 = arith.addf %504, %508 : vector<1x1x256xf32>
    %510 = arith.addf %500, %509 : vector<1x1x256xf32>
    %c47 = arith.constant 47 : index
    %511 = memref.load %arg6[%c47] : memref<98xf32, #tpu.memory_space<smem>>
    %512 = vector.extract_strided_slice %64 {offsets = [0, 0, 101], sizes = [1, 1, 256], strides = [1, 1, 1]} : vector<1x1x358xf32> to vector<1x1x256xf32>
    %513 = vector.broadcast %511 : f32 to vector<1x1x256xf32>
    %514 = arith.mulf %513, %512 : vector<1x1x256xf32>
    %c96 = arith.constant 96 : index
    %515 = memref.load %arg6[%c96] : memref<98xf32, #tpu.memory_space<smem>>
    %516 = vector.extract_strided_slice %65 {offsets = [0, 0, 101], sizes = [1, 1, 256], strides = [1, 1, 1]} : vector<1x1x358xf32> to vector<1x1x256xf32>
    %517 = vector.broadcast %515 : f32 to vector<1x1x256xf32>
    %518 = arith.mulf %517, %516 : vector<1x1x256xf32>
    %519 = arith.addf %514, %518 : vector<1x1x256xf32>
    %520 = arith.addf %510, %519 : vector<1x1x256xf32>
    %c-2_i32 = arith.constant -2 : i32
    %521 = vector.broadcast %c-2_i32 : i32 to vector<1x256xi32>
    %522 = arith.cmpi sge, %68, %521 : vector<1x256xi32>
    %c14_i32 = arith.constant 14 : i32
    %523 = vector.broadcast %c14_i32 : i32 to vector<1x256xi32>
    %524 = arith.cmpi slt, %68, %523 : vector<1x256xi32>
    %525 = arith.andi %522, %524 : vector<1x256xi1>
    %cst_33 = arith.constant 0.000000e+00 : f32
    %526 = vector.shape_cast %525 : vector<1x256xi1> to vector<1x1x256xi1>
    %527 = vector.broadcast %cst_33 : f32 to vector<1x1x256xf32>
    %528 = arith.select %526, %520, %527 : vector<1x1x256xi1>, vector<1x1x256xf32>
    %529 = arith.addf %451, %528 : vector<1x1x256xf32>
    %c6 = arith.constant 6 : index
    %530 = memref.load %arg6[%c6] : memref<98xf32, #tpu.memory_space<smem>>
    %531 = vector.extract_strided_slice %64 {offsets = [0, 0, 6], sizes = [1, 1, 256], strides = [1, 1, 1]} : vector<1x1x358xf32> to vector<1x1x256xf32>
    %532 = vector.broadcast %530 : f32 to vector<1x1x256xf32>
    %533 = arith.mulf %532, %531 : vector<1x1x256xf32>
    %c55 = arith.constant 55 : index
    %534 = memref.load %arg6[%c55] : memref<98xf32, #tpu.memory_space<smem>>
    %535 = vector.extract_strided_slice %65 {offsets = [0, 0, 6], sizes = [1, 1, 256], strides = [1, 1, 1]} : vector<1x1x358xf32> to vector<1x1x256xf32>
    %536 = vector.broadcast %534 : f32 to vector<1x1x256xf32>
    %537 = arith.mulf %536, %535 : vector<1x1x256xf32>
    %538 = arith.addf %533, %537 : vector<1x1x256xf32>
    %c13 = arith.constant 13 : index
    %539 = memref.load %arg6[%c13] : memref<98xf32, #tpu.memory_space<smem>>
    %540 = vector.extract_strided_slice %64 {offsets = [0, 0, 22], sizes = [1, 1, 256], strides = [1, 1, 1]} : vector<1x1x358xf32> to vector<1x1x256xf32>
    %541 = vector.broadcast %539 : f32 to vector<1x1x256xf32>
    %542 = arith.mulf %541, %540 : vector<1x1x256xf32>
    %c62 = arith.constant 62 : index
    %543 = memref.load %arg6[%c62] : memref<98xf32, #tpu.memory_space<smem>>
    %544 = vector.extract_strided_slice %65 {offsets = [0, 0, 22], sizes = [1, 1, 256], strides = [1, 1, 1]} : vector<1x1x358xf32> to vector<1x1x256xf32>
    %545 = vector.broadcast %543 : f32 to vector<1x1x256xf32>
    %546 = arith.mulf %545, %544 : vector<1x1x256xf32>
    %547 = arith.addf %542, %546 : vector<1x1x256xf32>
    %548 = arith.addf %538, %547 : vector<1x1x256xf32>
    %c20 = arith.constant 20 : index
    %549 = memref.load %arg6[%c20] : memref<98xf32, #tpu.memory_space<smem>>
    %550 = vector.extract_strided_slice %64 {offsets = [0, 0, 38], sizes = [1, 1, 256], strides = [1, 1, 1]} : vector<1x1x358xf32> to vector<1x1x256xf32>
    %551 = vector.broadcast %549 : f32 to vector<1x1x256xf32>
    %552 = arith.mulf %551, %550 : vector<1x1x256xf32>
    %c69 = arith.constant 69 : index
    %553 = memref.load %arg6[%c69] : memref<98xf32, #tpu.memory_space<smem>>
    %554 = vector.extract_strided_slice %65 {offsets = [0, 0, 38], sizes = [1, 1, 256], strides = [1, 1, 1]} : vector<1x1x358xf32> to vector<1x1x256xf32>
    %555 = vector.broadcast %553 : f32 to vector<1x1x256xf32>
    %556 = arith.mulf %555, %554 : vector<1x1x256xf32>
    %557 = arith.addf %552, %556 : vector<1x1x256xf32>
    %558 = arith.addf %548, %557 : vector<1x1x256xf32>
    %c27 = arith.constant 27 : index
    %559 = memref.load %arg6[%c27] : memref<98xf32, #tpu.memory_space<smem>>
    %560 = vector.extract_strided_slice %64 {offsets = [0, 0, 54], sizes = [1, 1, 256], strides = [1, 1, 1]} : vector<1x1x358xf32> to vector<1x1x256xf32>
    %561 = vector.broadcast %559 : f32 to vector<1x1x256xf32>
    %562 = arith.mulf %561, %560 : vector<1x1x256xf32>
    %c76 = arith.constant 76 : index
    %563 = memref.load %arg6[%c76] : memref<98xf32, #tpu.memory_space<smem>>
    %564 = vector.extract_strided_slice %65 {offsets = [0, 0, 54], sizes = [1, 1, 256], strides = [1, 1, 1]} : vector<1x1x358xf32> to vector<1x1x256xf32>
    %565 = vector.broadcast %563 : f32 to vector<1x1x256xf32>
    %566 = arith.mulf %565, %564 : vector<1x1x256xf32>
    %567 = arith.addf %562, %566 : vector<1x1x256xf32>
    %568 = arith.addf %558, %567 : vector<1x1x256xf32>
    %c34 = arith.constant 34 : index
    %569 = memref.load %arg6[%c34] : memref<98xf32, #tpu.memory_space<smem>>
    %570 = vector.extract_strided_slice %64 {offsets = [0, 0, 70], sizes = [1, 1, 256], strides = [1, 1, 1]} : vector<1x1x358xf32> to vector<1x1x256xf32>
    %571 = vector.broadcast %569 : f32 to vector<1x1x256xf32>
    %572 = arith.mulf %571, %570 : vector<1x1x256xf32>
    %c83 = arith.constant 83 : index
    %573 = memref.load %arg6[%c83] : memref<98xf32, #tpu.memory_space<smem>>
    %574 = vector.extract_strided_slice %65 {offsets = [0, 0, 70], sizes = [1, 1, 256], strides = [1, 1, 1]} : vector<1x1x358xf32> to vector<1x1x256xf32>
    %575 = vector.broadcast %573 : f32 to vector<1x1x256xf32>
    %576 = arith.mulf %575, %574 : vector<1x1x256xf32>
    %577 = arith.addf %572, %576 : vector<1x1x256xf32>
    %578 = arith.addf %568, %577 : vector<1x1x256xf32>
    %c41 = arith.constant 41 : index
    %579 = memref.load %arg6[%c41] : memref<98xf32, #tpu.memory_space<smem>>
    %580 = vector.extract_strided_slice %64 {offsets = [0, 0, 86], sizes = [1, 1, 256], strides = [1, 1, 1]} : vector<1x1x358xf32> to vector<1x1x256xf32>
    %581 = vector.broadcast %579 : f32 to vector<1x1x256xf32>
    %582 = arith.mulf %581, %580 : vector<1x1x256xf32>
    %c90 = arith.constant 90 : index
    %583 = memref.load %arg6[%c90] : memref<98xf32, #tpu.memory_space<smem>>
    %584 = vector.extract_strided_slice %65 {offsets = [0, 0, 86], sizes = [1, 1, 256], strides = [1, 1, 1]} : vector<1x1x358xf32> to vector<1x1x256xf32>
    %585 = vector.broadcast %583 : f32 to vector<1x1x256xf32>
    %586 = arith.mulf %585, %584 : vector<1x1x256xf32>
    %587 = arith.addf %582, %586 : vector<1x1x256xf32>
    %588 = arith.addf %578, %587 : vector<1x1x256xf32>
    %c48 = arith.constant 48 : index
    %589 = memref.load %arg6[%c48] : memref<98xf32, #tpu.memory_space<smem>>
    %590 = vector.extract_strided_slice %64 {offsets = [0, 0, 102], sizes = [1, 1, 256], strides = [1, 1, 1]} : vector<1x1x358xf32> to vector<1x1x256xf32>
    %591 = vector.broadcast %589 : f32 to vector<1x1x256xf32>
    %592 = arith.mulf %591, %590 : vector<1x1x256xf32>
    %c97 = arith.constant 97 : index
    %593 = memref.load %arg6[%c97] : memref<98xf32, #tpu.memory_space<smem>>
    %594 = vector.extract_strided_slice %65 {offsets = [0, 0, 102], sizes = [1, 1, 256], strides = [1, 1, 1]} : vector<1x1x358xf32> to vector<1x1x256xf32>
    %595 = vector.broadcast %593 : f32 to vector<1x1x256xf32>
    %596 = arith.mulf %595, %594 : vector<1x1x256xf32>
    %597 = arith.addf %592, %596 : vector<1x1x256xf32>
    %598 = arith.addf %588, %597 : vector<1x1x256xf32>
    %c-3_i32 = arith.constant -3 : i32
    %599 = vector.broadcast %c-3_i32 : i32 to vector<1x256xi32>
    %600 = arith.cmpi sge, %68, %599 : vector<1x256xi32>
    %c13_i32 = arith.constant 13 : i32
    %601 = vector.broadcast %c13_i32 : i32 to vector<1x256xi32>
    %602 = arith.cmpi slt, %68, %601 : vector<1x256xi32>
    %603 = arith.andi %600, %602 : vector<1x256xi1>
    %cst_34 = arith.constant 0.000000e+00 : f32
    %604 = vector.shape_cast %603 : vector<1x256xi1> to vector<1x1x256xi1>
    %605 = vector.broadcast %cst_34 : f32 to vector<1x1x256xf32>
    %606 = arith.select %604, %598, %605 : vector<1x1x256xi1>, vector<1x1x256xf32>
    %607 = arith.addf %529, %606 : vector<1x1x256xf32>
    %c0_35 = arith.constant 0 : index
    %608 = memref.load %arg7[%c0_35] : memref<1xf32, #tpu.memory_space<smem>>
    %609 = vector.broadcast %608 : f32 to vector<1x1x256xf32>
    %610 = arith.addf %607, %609 : vector<1x1x256xf32>
    %611 = arith.negf %610 : vector<1x1x256xf32>
    %612 = math.exp %611 : vector<1x1x256xf32>
    %cst_36 = arith.constant 1.000000e+00 : f32
    %613 = vector.broadcast %cst_36 : f32 to vector<1x1x256xf32>
    %614 = arith.addf %613, %612 : vector<1x1x256xf32>
    %615 = arith.divf %613, %614 : vector<1x1x256xf32>
    %616 = vector.broadcast %615 : vector<1x1x256xf32> to vector<1x32x256xf32>
    %617 = arith.mulf %56, %616 : vector<1x32x256xf32>
    %c0_37 = arith.constant 0 : index
    %c0_38 = arith.constant 0 : index
    %c0_39 = arith.constant 0 : index
    %618 = vector.load %arg8[%c0_37, %c0_38, %c0_39] : memref<1x32x256xf32, #tpu.memory_space<vmem>>, vector<1x32x256xf32>
    tpu.vector_store %arg8[%c0_37, %c0_38, %c0_39], %617 {strides = array<i32>} : memref<1x32x256xf32, #tpu.memory_space<vmem>>, vector<1x32x256xf32>,
    return
  }
  func.func @transform_0(%arg0: i32) -> (i32, i32, i32) {
    %c0_i32 = arith.constant 0 : i32
    %c0_i32_0 = arith.constant 0 : i32
    %c0_i32_1 = arith.constant 0 : i32
    return %arg0, %c0_i32, %c0_i32_0 : i32, i32, i32
  }
  func.func @transform_1(%arg0: i32) -> (i32, i32) {
    %c0_i32 = arith.constant 0 : i32
    %c0_i32_0 = arith.constant 0 : i32
    %c0_i32_1 = arith.constant 0 : i32
    return %c0_i32, %c0_i32_0 : i32, i32
  }
  func.func @transform_2(%arg0: i32) -> i32 {
    %c0_i32 = arith.constant 0 : i32
    %c0_i32_0 = arith.constant 0 : i32
    return %c0_i32 : i32
  }
  func.func @transform_3(%arg0: i32) -> (i32, i32) {
    %c0_i32 = arith.constant 0 : i32
    %c0_i32_0 = arith.constant 0 : i32
    %c0_i32_1 = arith.constant 0 : i32
    return %c0_i32, %c0_i32_0 : i32, i32
  }
  func.func @transform_4(%arg0: i32) -> (i32, i32) {
    %c0_i32 = arith.constant 0 : i32
    %c0_i32_0 = arith.constant 0 : i32
    %c0_i32_1 = arith.constant 0 : i32
    return %c0_i32, %c0_i32_0 : i32, i32
  }
  func.func @transform_5(%arg0: i32) -> i32 {
    %c0_i32 = arith.constant 0 : i32
    %c0_i32_0 = arith.constant 0 : i32
    return %c0_i32 : i32
  }
  func.func @transform_6(%arg0: i32) -> i32 {
    %c0_i32 = arith.constant 0 : i32
    %c0_i32_0 = arith.constant 0 : i32
    return %c0_i32 : i32
  }
  func.func @transform_7(%arg0: i32) -> (i32, i32, i32) {
    %c0_i32 = arith.constant 0 : i32
    %c0_i32_0 = arith.constant 0 : i32
    %c0_i32_1 = arith.constant 0 : i32
    return %arg0, %c0_i32, %c0_i32_0 : i32, i32, i32
  }
}

</mosaic_0001>

<llo_original>
// kernel: tpu_custom_call.1
$region0: #{tpu_custom_call.1}
  #allocation0 [shape = 'u32[]', space=smem, size = 0x4, offset = 0x4, fixed_abs, tag = 'smem constant byte address 0x4 - core index']
  #allocation1 [shape = 'u32[144,128]{1,0:T(1,128)}', space=vmem, size = 0x12000, scoped, tag = 'internal scratch']
  #allocation2 [shape = 'f32[1]{0:T(128)S(6)}', space=smem, size = 0x200, scoped, tag = 'scoped memory for tpu_custom_call.1']
  %s0 = inlined_call_operand.hbm [shape: f32[2,32,256], index: 0, kind: input, shape index: {}]
  %s1 = inlined_call_operand.vmem [shape: f32[32,2], index: 1, kind: input, shape index: {}]
  %s2 = inlined_call_operand.vmem [shape: f32[2], index: 2, kind: input, shape index: {}]
  %s3 = inlined_call_operand.vmem [shape: f32[32,2], index: 3, kind: input, shape index: {}]
  %s4 = inlined_call_operand.vmem [shape: f32[32,1], index: 4, kind: input, shape index: {}]
  %s5 = inlined_call_operand.vmem [shape: f32[98], index: 5, kind: input, shape index: {}]
  %s6 = inlined_call_operand.<no memory space> [shape: f32[1], index: 6, kind: input, shape index: {}]
  %s7 = inlined_call_operand.hbm [shape: f32[2,32,256], index: 7, kind: output, shape index: {}]
  %s8 = sld [smem:[#allocation0]]
  $region73: #{tpu_custom_call.1} parent=0
    _
  %s10 = ssub.s32 1, %s8
  %s11 = scalar_select 0, %s10, %s8
  %12 = sst [smem:[#allocation2]] %s6
  $region1: #{tpu_custom_call.1} parent=0
    #allocation3 [shape = 'u8[65536]{0}', space=vmem, size = 0x10000, scoped, tag = 'input window, operand 0']
    #allocation4 [shape = 's32[2]{0}', space=sflag, size = 0x8, scoped, tag = 'scoped memory for tpu_custom_call.1']
    #allocation5 [shape = 's32[2]{0}', space=sflag, size = 0x8, scoped, tag = 'scoped memory for tpu_custom_call.1']
    #allocation6 [shape = 's32[2]{0}', space=sflag, size = 0x8, scoped, tag = 'scoped memory for tpu_custom_call.1']
    #allocation7 [shape = 'u8[512]{0}', space=smem, size = 0x200, scoped, tag = 'input window, operand 2, single buffered']
    #allocation8 [shape = 'u8[512]{0}', space=smem, size = 0x200, scoped, tag = 'input window, operand 5, single buffered']
    #allocation9 [shape = 's32[1]{0}', space=sflag, size = 0x4, scoped, tag = 'scoped memory for tpu_custom_call.1']
    #allocation10 [shape = 'u8[65536]{0}', space=vmem, size = 0x10000, scoped, tag = 'output window, operand 0']
    %13 = vsyncpa [#allocation4], 0
    %s14 = scalar_lea.sflag [#allocation4], 1
    %15 = vsyncpa %s14, 0
    %16 = vsyncpa [#allocation6], 0
    %17 = vsyncpa [#allocation9], 0
    %18 = vsyncpa [#allocation5], 0
    %s19 = scalar_lea.sflag [#allocation5], 1
    %20 = vsyncpa %s19, 0
    loop: start=0, step=1, limit=4
    $region2: #{tpu_custom_call.1} parent=1 // loop_pre_header
      _
    $region3: #{tpu_custom_call.1} parent=1 // loop_header
      %s22 = sphi 0, %s26
      %p23 = scmp.ge.s32.totalorder %s22, 4
      %s32 = sphi 0, %s34
      %s35 = sphi 0, %s32
      %s36 = sphi 0, %s35
      %s52 = sphi 0, %s36
      %s56 = sphi 0, %s56
      %s58 = sphi 0, %s56
      %s59 = sphi 0, %s58
      %s73 = sphi 0, %s59
      %s77 = sphi 0, %s77
      %s79 = sphi 0, %s77
      %s80 = sphi 0, %s79
      %s94 = sphi 0, %s80
      %s98 = sphi 0, %s98
      %s100 = sphi 0, %s98
      %s101 = sphi 0, %s100
      %s115 = sphi 0, %s101
      %s119 = sphi 0, %s119
      %s121 = sphi 0, %s119
      %s122 = sphi 0, %s121
      %s136 = sphi 0, %s122
      %s140 = sphi 0, %s140
      %s142 = sphi 0, %s140
      %s143 = sphi 0, %s142
      %s157 = sphi 0, %s143
      %s161 = sphi 0, %s161
      %s163 = sphi 0, %s161
      %s164 = sphi 0, %s163
      %s178 = sphi 0, %s164
      %s184 = sphi 0, %s186
      %s187 = sphi 0, %s184
      %s188 = sphi 0, %s187
      %s204 = sphi 0, %s188
    $region4: #{tpu_custom_call.1} parent=1 // loop_header_branch
      %25 = sbr.rel (%p23) target = $region8
    $region5: #{tpu_custom_call.1} parent=1 // loop_body
      %s27 = ssub.s32 %s22, 1
      %s28 = ssub.s32 %s22, 2
      %s29 = sadd.s32 %s22, 1
      %s30 = ssub.s32 %s22, %s29
      %p31 = scmp.eq.s32.totalorder %s30, 0
      %s33 = sadd.s32 %s32, 1
      %s34 = scalar_select %p31, %s32, %s33
      %p37 = pneg %p31
      %p38 = scmp.eq.s32.totalorder %s22, 1
      %p39 = por %p37, %p38
      %p40 = scmp.ne.s32.totalorder %s32, %s35
      %p41 = scmp.eq.s32.totalorder %s22, 0
      %p42 = por %p40, %p41
      %p43 = scmp.ne.s32.totalorder %s32, %s35
      %p44 = scmp.eq.s32.totalorder %s27, 1
      %p45 = por %p43, %p44
      %p46 = scmp.ne.s32.totalorder %s35, %s36
      %p47 = scmp.eq.s32.totalorder %s27, 0
      %p48 = por %p46, %p47
      %p49 = scmp.ne.s32.totalorder %s35, %s36
      %p50 = scmp.eq.s32.totalorder %s28, 1
      %p51 = por %p49, %p50
      %p53 = scmp.ne.s32.totalorder %s36, %s52
      %p54 = scmp.eq.s32.totalorder %s28, 0
      %p55 = por %p53, %p54
      %s57 = sadd.s32 %s56, 1
      %p60 = scmp.eq.s32.totalorder %s22, 1
      %p61 = scmp.ne.s32.totalorder %s56, %s58
      %p62 = scmp.eq.s32.totalorder %s22, 0
      %p63 = por %p61, %p62
      %p64 = scmp.ne.s32.totalorder %s56, %s58
      %p65 = scmp.eq.s32.totalorder %s27, 1
      %p66 = por %p64, %p65
      %p67 = scmp.ne.s32.totalorder %s58, %s59
      %p68 = scmp.eq.s32.totalorder %s27, 0
      %p69 = por %p67, %p68
      %p70 = scmp.ne.s32.totalorder %s58, %s59
      %p71 = scmp.eq.s32.totalorder %s28, 1
      %p72 = por %p70, %p71
      %p74 = scmp.ne.s32.totalorder %s59, %s73
      %p75 = scmp.eq.s32.totalorder %s28, 0
      %p76 = por %p74, %p75
      %s78 = sadd.s32 %s77, 1
      %p81 = scmp.eq.s32.totalorder %s22, 1
      %p82 = scmp.ne.s32.totalorder %s77, %s79
      %p83 = scmp.eq.s32.totalorder %s22, 0
      %p84 = por %p82, %p83
      %p85 = scmp.ne.s32.totalorder %s77, %s79
      %p86 = scmp.eq.s32.totalorder %s27, 1
      %p87 = por %p85, %p86
      %p88 = scmp.ne.s32.totalorder %s79, %s80
      %p89 = scmp.eq.s32.totalorder %s27, 0
      %p90 = por %p88, %p89
      %p91 = scmp.ne.s32.totalorder %s79, %s80
      %p92 = scmp.eq.s32.totalorder %s28, 1
      %p93 = por %p91, %p92
      %p95 = scmp.ne.s32.totalorder %s80, %s94
      %p96 = scmp.eq.s32.totalorder %s28, 0
      %p97 = por %p95, %p96
      %s99 = sadd.s32 %s98, 1
      %p102 = scmp.eq.s32.totalorder %s22, 1
      %p103 = scmp.ne.s32.totalorder %s98, %s100
      %p104 = scmp.eq.s32.totalorder %s22, 0
      %p105 = por %p103, %p104
      %p106 = scmp.ne.s32.totalorder %s98, %s100
      %p107 = scmp.eq.s32.totalorder %s27, 1
      %p108 = por %p106, %p107
      %p109 = scmp.ne.s32.totalorder %s100, %s101
      %p110 = scmp.eq.s32.totalorder %s27, 0
      %p111 = por %p109, %p110
      %p112 = scmp.ne.s32.totalorder %s100, %s101
      %p113 = scmp.eq.s32.totalorder %s28, 1
      %p114 = por %p112, %p113
      %p116 = scmp.ne.s32.totalorder %s101, %s115
      %p117 = scmp.eq.s32.totalorder %s28, 0
      %p118 = por %p116, %p117
      %s120 = sadd.s32 %s119, 1
      %p123 = scmp.eq.s32.totalorder %s22, 1
      %p124 = scmp.ne.s32.totalorder %s119, %s121
      %p125 = scmp.eq.s32.totalorder %s22, 0
      %p126 = por %p124, %p125
      %p127 = scmp.ne.s32.totalorder %s119, %s121
      %p128 = scmp.eq.s32.totalorder %s27, 1
      %p129 = por %p127, %p128
      %p130 = scmp.ne.s32.totalorder %s121, %s122
      %p131 = scmp.eq.s32.totalorder %s27, 0
      %p132 = por %p130, %p131
      %p133 = scmp.ne.s32.totalorder %s121, %s122
      %p134 = scmp.eq.s32.totalorder %s28, 1
      %p135 = por %p133, %p134
      %p137 = scmp.ne.s32.totalorder %s122, %s136
      %p138 = scmp.eq.s32.totalorder %s28, 0
      %p139 = por %p137, %p138
      %s141 = sadd.s32 %s140, 1
      %p144 = scmp.eq.s32.totalorder %s22, 1
      %p145 = scmp.ne.s32.totalorder %s140, %s142
      %p146 = scmp.eq.s32.totalorder %s22, 0
      %p147 = por %p145, %p146
      %p148 = scmp.ne.s32.totalorder %s140, %s142
      %p149 = scmp.eq.s32.totalorder %s27, 1
      %p150 = por %p148, %p149
      %p151 = scmp.ne.s32.totalorder %s142, %s143
      %p152 = scmp.eq.s32.totalorder %s27, 0
      %p153 = por %p151, %p152
      %p154 = scmp.ne.s32.totalorder %s142, %s143
      %p155 = scmp.eq.s32.totalorder %s28, 1
      %p156 = por %p154, %p155
      %p158 = scmp.ne.s32.totalorder %s143, %s157
      %p159 = scmp.eq.s32.totalorder %s28, 0
      %p160 = por %p158, %p159
      %s162 = sadd.s32 %s161, 1
      %p165 = scmp.eq.s32.totalorder %s22, 1
      %p166 = scmp.ne.s32.totalorder %s161, %s163
      %p167 = scmp.eq.s32.totalorder %s22, 0
      %p168 = por %p166, %p167
      %p169 = scmp.ne.s32.totalorder %s161, %s163
      %p170 = scmp.eq.s32.totalorder %s27, 1
      %p171 = por %p169, %p170
      %p172 = scmp.ne.s32.totalorder %s163, %s164
      %p173 = scmp.eq.s32.totalorder %s27, 0
      %p174 = por %p172, %p173
      %p175 = scmp.ne.s32.totalorder %s163, %s164
      %p176 = scmp.eq.s32.totalorder %s28, 1
      %p177 = por %p175, %p176
      %p179 = scmp.ne.s32.totalorder %s164, %s178
      %p180 = scmp.eq.s32.totalorder %s28, 0
      %p181 = por %p179, %p180
      %s182 = ssub.s32 %s22, %s29
      %p183 = scmp.eq.s32.totalorder %s182, 0
      %s185 = sadd.s32 %s184, 1
      %s186 = scalar_select %p183, %s184, %s185
      %p189 = pneg %p183
      %p190 = scmp.eq.s32.totalorder %s22, 1
      %p191 = por %p189, %p190
      %p192 = scmp.ne.s32.totalorder %s184, %s187
      %p193 = scmp.eq.s32.totalorder %s22, 0
      %p194 = por %p192, %p193
      %p195 = scmp.ne.s32.totalorder %s184, %s187
      %p196 = scmp.eq.s32.totalorder %s27, 1
      %p197 = por %p195, %p196
      %p198 = scmp.ne.s32.totalorder %s187, %s188
      %p199 = scmp.eq.s32.totalorder %s27, 0
      %p200 = por %p198, %p199
      %p201 = scmp.ne.s32.totalorder %s187, %s188
      %p202 = scmp.eq.s32.totalorder %s28, 1
      %p203 = por %p201, %p202
      %p205 = scmp.ne.s32.totalorder %s188, %s204
      %p206 = scmp.eq.s32.totalorder %s28, 0
      %p207 = por %p205, %p206
      %p208 = scmp.le.s32.totalorder 1, %s22
      %p209 = scmp.lt.s32.totalorder %s22, 3
      %p210 = pnand %p208, %p209
      %p211 = pneg %p210
      // Predicated region
      $region9: #{tpu_custom_call.1} parent=5 // pred_check
        _
      $region10: #{tpu_custom_call.1} parent=5 // pred_check_branch
        %213 = sbr.rel (%p210) target = $region12
      $region11: #{tpu_custom_call.1} parent=5 // pred_region
        %s214 = ssub.s32 %s22, 1
        // Predicated region
        $region13: #{tpu_custom_call.1} parent=11 // pred_check
          %p215 = pneg %p69
        $region14: #{tpu_custom_call.1} parent=11 // pred_check_branch
          %217 = sbr.rel (%p215) target = $region16
        $region15: #{tpu_custom_call.1} parent=11 // pred_region
          _
        $region16: #{tpu_custom_call.1} parent=11 // pred_fallthru
          _
        // Predicated region
        $region17: #{tpu_custom_call.1} parent=11 // pred_check
          %p218 = pneg %p90
        $region18: #{tpu_custom_call.1} parent=11 // pred_check_branch
          %220 = sbr.rel (%p218) target = $region20
        $region19: #{tpu_custom_call.1} parent=11 // pred_region
          %s222 = ssub.s32 16, 16
          %223 = vsyncadd [#allocation6], %s222
          %s225 = sshll.u32 %s2, 4
          %s226 = int_to_ptr.vmem [resolvable:$true] %s225
          %228 = dma.vmem_to_smem %s226, 16, [#allocation7], [#allocation6]
        $region20: #{tpu_custom_call.1} parent=11 // pred_fallthru
          _
        // Predicated region
        $region21: #{tpu_custom_call.1} parent=11 // pred_check
          %p229 = pneg %p111
        $region22: #{tpu_custom_call.1} parent=11 // pred_check_branch
          %231 = sbr.rel (%p229) target = $region24
        $region23: #{tpu_custom_call.1} parent=11 // pred_region
          _
        $region24: #{tpu_custom_call.1} parent=11 // pred_fallthru
          _
        // Predicated region
        $region25: #{tpu_custom_call.1} parent=11 // pred_check
          %p232 = pneg %p132
        $region26: #{tpu_custom_call.1} parent=11 // pred_check_branch
          %234 = sbr.rel (%p232) target = $region28
        $region27: #{tpu_custom_call.1} parent=11 // pred_region
          _
        $region28: #{tpu_custom_call.1} parent=11 // pred_fallthru
          _
        // Predicated region
        $region29: #{tpu_custom_call.1} parent=11 // pred_check
          %p235 = pneg %p153
        $region30: #{tpu_custom_call.1} parent=11 // pred_check_branch
          %237 = sbr.rel (%p235) target = $region32
        $region31: #{tpu_custom_call.1} parent=11 // pred_region
          %s239 = ssub.s32 16, 16
          %240 = vsyncadd [#allocation9], %s239
          %s242 = sshll.u32 %s5, 4
          %s243 = int_to_ptr.vmem [resolvable:$true] %s242
          %245 = dma.vmem_to_smem %s243, 16, [#allocation8], [#allocation9]
        $region32: #{tpu_custom_call.1} parent=11 // pred_fallthru
          _
        // Predicated region
        $region33: #{tpu_custom_call.1} parent=11 // pred_check
          %p246 = pneg %p174
        $region34: #{tpu_custom_call.1} parent=11 // pred_check_branch
          %248 = sbr.rel (%p246) target = $region36
        $region35: #{tpu_custom_call.1} parent=11 // pred_region
          _
        $region36: #{tpu_custom_call.1} parent=11 // pred_fallthru
          _
      $region12: #{tpu_custom_call.1} parent=5 // pred_fallthru
        _
      %p249 = scmp.lt.s32.totalorder %s22, 2
      // Predicated region
      $region37: #{tpu_custom_call.1} parent=5 // pred_check
        %p250 = pneg %p249
      $region38: #{tpu_custom_call.1} parent=5 // pred_check_branch
        %252 = sbr.rel (%p250) target = $region40
      $region39: #{tpu_custom_call.1} parent=5 // pred_region
        // Predicated region
        $region41: #{tpu_custom_call.1} parent=39 // pred_check
          %p253 = pneg %p42
        $region42: #{tpu_custom_call.1} parent=39 // pred_check_branch
          %255 = sbr.rel (%p253) target = $region44
        $region43: #{tpu_custom_call.1} parent=39 // pred_region
          %s256 = sand.u32 %s32, 1
          %s257 = scalar_lea.sflag [#allocation4], %s256
          %s258 = sand.u32 %s32, 1
          %s259 = smul.addr %s258, 64
          %s260 = scalar_lea.vmem [#allocation3], %s259
          %s262 = ssub.s32 1024, 1024
          %263 = vsyncadd %s257, %s262
          %s264 = smul.addr %s22, 8
          %s265 = smul.addr %s264, 128
          %s266 = scalar_lea.hbm %s0, %s265
          %s267 = sshll.u32 %s260, 4
          %s268 = int_to_ptr.vmem [resolvable:$true] %s267
          %273 = dma.hbm_to_vmem [thread:$0]  %s266, 1024, %s268, %s257, 256, 256, 16
        $region44: #{tpu_custom_call.1} parent=39 // pred_fallthru
          _
      $region40: #{tpu_custom_call.1} parent=5 // pred_fallthru
        _
      %p274 = scmp.le.s32.totalorder 1, %s22
      %p275 = scmp.lt.s32.totalorder %s22, 3
      %p276 = pnand %p274, %p275
      %p277 = pneg %p276
      // Predicated region
      $region45: #{tpu_custom_call.1} parent=5 // pred_check
        _
      $region46: #{tpu_custom_call.1} parent=5 // pred_check_branch
        %279 = sbr.rel (%p276) target = $region48
      $region47: #{tpu_custom_call.1} parent=5 // pred_region
        %s280 = ssub.s32 %s22, 1
        %s281 = sand.u32 %s35, 1
        %s282 = scalar_lea.sflag [#allocation4], %s281
        %s283 = sand.u32 %s35, 1
        %s284 = smul.addr %s283, 64
        %s285 = scalar_lea.vmem [#allocation3], %s284
        // Predicated region
        $region49: #{tpu_custom_call.1} parent=47 // pred_check
          %p286 = pneg %p48
        $region50: #{tpu_custom_call.1} parent=47 // pred_check_branch
          %288 = sbr.rel (%p286) target = $region52
        $region51: #{tpu_custom_call.1} parent=47 // pred_region
          %289 = dma.done %s282, 1024
        $region52: #{tpu_custom_call.1} parent=47 // pred_fallthru
          _
        // Predicated region
        $region53: #{tpu_custom_call.1} parent=47 // pred_check
          %p290 = pneg %p90
        $region54: #{tpu_custom_call.1} parent=47 // pred_check_branch
          %292 = sbr.rel (%p290) target = $region56
        $region55: #{tpu_custom_call.1} parent=47 // pred_region
          %293 = dma.done [#allocation6], 16
        $region56: #{tpu_custom_call.1} parent=47 // pred_fallthru
          _
        // Predicated region
        $region57: #{tpu_custom_call.1} parent=47 // pred_check
          %p294 = pneg %p153
        $region58: #{tpu_custom_call.1} parent=47 // pred_check_branch
          %296 = sbr.rel (%p294) target = $region60
        $region59: #{tpu_custom_call.1} parent=47 // pred_region
          %297 = dma.done [#allocation9], 16
        $region60: #{tpu_custom_call.1} parent=47 // pred_fallthru
          _
        %298 = sfence
        %s299 = sand.u32 %s35, 1
        %s300 = scalar_lea.sflag [#allocation4], %s299
        %s301 = sand.u32 %s35, 1
        %s302 = smul.addr %s301, 64
        %s303 = scalar_lea.vmem [#allocation3], %s302
        %p304 = pneg %p48
        %p305 = pneg %p45
        %p306 = pneg %p69
        %p307 = pneg %p66
        %p308 = pneg %p90
        %p309 = pneg %p87
        %p310 = pneg %p111
        %p311 = pneg %p108
        %p312 = pneg %p132
        %p313 = pneg %p129
        %p314 = pneg %p153
        %p315 = pneg %p150
        %p316 = pneg %p174
        %p317 = pneg %p171
        %p318 = pneg %p200
        %p319 = pneg %p197
        %s320 = sand.u32 %s187, 1
        %s321 = scalar_lea.sflag [#allocation5], %s320
        %s322 = sand.u32 %s187, 1
        %s323 = smul.addr %s322, 64
        %s324 = scalar_lea.vmem [#allocation10], %s323
        %v325 = vld [vmem:[%s285] sm:$0xff]
        %v326 = vld [vmem:[%s285 + $0x8] sm:$0xff]
        %v327 = vld [vmem:[%s285 + $0x10] sm:$0xff]
        %v328 = vld [vmem:[%s285 + $0x18] sm:$0xff]
        %v329 = vld [vmem:[%s285 + $0x20] sm:$0xff]
        %v330 = vld [vmem:[%s285 + $0x28] sm:$0xff]
        %v331 = vld [vmem:[%s285 + $0x30] sm:$0xff]
        %v332 = vld [vmem:[%s285 + $0x38] sm:$0xff]
        %v333 = vadd.f32 %v325, %v326
        %334 = vadd.xlane.f32.xlu0 %v333
        %v335 = vpop.xlane.xlu0 %334
        %v336 = vadd.f32 %v327, %v328
        %337 = vadd.xlane.f32.xlu0 %v336
        %v338 = vpop.xlane.xlu0 %337
        %v339 = vadd.f32 %v329, %v330
        %340 = vadd.xlane.f32.xlu0 %v339
        %v341 = vpop.xlane.xlu0 %340
        %v342 = vadd.f32 %v331, %v332
        %343 = vadd.xlane.f32.xlu0 %v342
        %v344 = vpop.xlane.xlu0 %343
        %v345 = vmul.f32 %v335, 0.00390625
        %v346 = vmul.f32 %v338, 0.00390625
        %v347 = vmul.f32 %v341, 0.00390625
        %v348 = vmul.f32 %v344, 0.00390625
        %v349 = vmax.f32 %v325, %v326
        %350 = vmax.xlane.f32.xlu0 %v349
        %v351 = vpop.xlane.xlu0 %350
        %v352 = vmax.f32 %v327, %v328
        %353 = vmax.xlane.f32.xlu0 %v352
        %v354 = vpop.xlane.xlu0 %353
        %v355 = vmax.f32 %v329, %v330
        %356 = vmax.xlane.f32.xlu0 %v355
        %v357 = vpop.xlane.xlu0 %356
        %v358 = vmax.f32 %v331, %v332
        %359 = vmax.xlane.f32.xlu0 %v358
        %v360 = vpop.xlane.xlu0 %359
        %vm361 = vcmask 7168
        %v362 = vsel %vm361, %v345, %v351
        %v363 = vsel %vm361, %v346, %v354
        %v364 = vsel %vm361, %v347, %v357
        %v365 = vsel %vm361, %v348, %v360
        %v366 = vld [vmem:[%s1] sm:$0xff]
        %v367 = vld [vmem:[%s1 + $0x8] sm:$0xff]
        %v368 = vld [vmem:[%s1 + $0x10] sm:$0xff]
        %v369 = vld [vmem:[%s1 + $0x18] sm:$0xff]
        %371 = vset.pattern.permute.xlu0 0
        %372 = vperm.xlu0 %371, %v366
        %v373 = vpop.permute.xlu0 %372
        %376 = vset.pattern.permute.xlu0 0
        %377 = vperm.xlu0 %376, %v367
        %v378 = vpop.permute.xlu0 %377
        %381 = vset.pattern.permute.xlu0 0
        %382 = vperm.xlu0 %381, %v368
        %v383 = vpop.permute.xlu0 %382
        %386 = vset.pattern.permute.xlu0 0
        %387 = vperm.xlu0 %386, %v369
        %v388 = vpop.permute.xlu0 %387
        %v390 = vmul.f32 %v373, %v362
        %v391 = vmul.f32 %v378, %v363
        %v392 = vmul.f32 %v383, %v364
        %v393 = vmul.f32 %v388, %v365
        %vm394 = vcmask 15360
        %v395 = vsel %vm394, %v390, 0.0
        %v396 = vsel %vm394, %v391, 0.0
        %v397 = vadd.f32 %v395, %v396
        %v398 = vsel %vm394, %v392, 0.0
        %v399 = vadd.f32 %v397, %v398
        %v400 = vsel %vm394, %v393, 0.0
        %v401 = vadd.f32 %v399, %v400
        %v402 = vrot.slane %v401, 4
        %v403 = vadd.f32 %v401, %v402
        %v404 = vrot.slane %v403, 2
        %v405 = vadd.f32 %v403, %v404
        %v406 = vrot.slane %v405, 1
        %v407 = vadd.f32 %v405, %v406
        %s408 = sld [smem:[#allocation7]]
        %v409 = vstv %s408
        %v410 = vadd.f32 %v407, %v409
        %v411 = vmax.f32 %v410, 0.0
        %v412 = vld [vmem:[%s3] sm:$0xff]
        %v413 = vld [vmem:[%s3 + $0x8] sm:$0xff]
        %v414 = vld [vmem:[%s3 + $0x10] sm:$0xff]
        %v415 = vld [vmem:[%s3 + $0x18] sm:$0xff]
        %417 = vset.pattern.permute.xlu0 0
        %418 = vperm.xlu0 %417, %v412
        %v419 = vpop.permute.xlu0 %418
        %422 = vset.pattern.permute.xlu0 0
        %423 = vperm.xlu0 %422, %v413
        %v424 = vpop.permute.xlu0 %423
        %427 = vset.pattern.permute.xlu0 0
        %428 = vperm.xlu0 %427, %v414
        %v429 = vpop.permute.xlu0 %428
        %432 = vset.pattern.permute.xlu0 0
        %433 = vperm.xlu0 %432, %v415
        %v434 = vpop.permute.xlu0 %433
        %v436 = vmul.f32 %v419, %v411
        %v437 = vmul.f32 %v424, %v411
        %v438 = vmul.f32 %v429, %v411
        %v439 = vmul.f32 %v434, %v411
        %v440 = vadd.f32 %v436, 0.0
        %v441 = vadd.f32 %v437, 0.0
        %v442 = vadd.f32 %v438, 0.0
        %v443 = vadd.f32 %v439, 0.0
        %444 = vset.pattern.permute.xlu0 1
        %445 = vperm.xlu0 %444, %v366
        %v446 = vpop.permute.xlu0 %445
        %448 = vset.pattern.permute.xlu0 1
        %449 = vperm.xlu0 %448, %v367
        %v450 = vpop.permute.xlu0 %449
        %452 = vset.pattern.permute.xlu0 1
        %453 = vperm.xlu0 %452, %v368
        %v454 = vpop.permute.xlu0 %453
        %456 = vset.pattern.permute.xlu0 1
        %457 = vperm.xlu0 %456, %v369
        %v458 = vpop.permute.xlu0 %457
        %v460 = vmul.f32 %v446, %v362
        %v461 = vmul.f32 %v450, %v363
        %v462 = vmul.f32 %v454, %v364
        %v463 = vmul.f32 %v458, %v365
        %v464 = vsel %vm394, %v460, 0.0
        %v465 = vsel %vm394, %v461, 0.0
        %v466 = vadd.f32 %v464, %v465
        %v467 = vsel %vm394, %v462, 0.0
        %v468 = vadd.f32 %v466, %v467
        %v469 = vsel %vm394, %v463, 0.0
        %v470 = vadd.f32 %v468, %v469
        %v471 = vrot.slane %v470, 4
        %v472 = vadd.f32 %v470, %v471
        %v473 = vrot.slane %v472, 2
        %v474 = vadd.f32 %v472, %v473
        %v475 = vrot.slane %v474, 1
        %v476 = vadd.f32 %v474, %v475
        %s477 = sld [smem:[#allocation7 + $0x1]]
        %v478 = vstv %s477
        %v479 = vadd.f32 %v476, %v478
        %v480 = vmax.f32 %v479, 0.0
        %481 = vset.pattern.permute.xlu0 1
        %482 = vperm.xlu0 %481, %v412
        %v483 = vpop.permute.xlu0 %482
        %485 = vset.pattern.permute.xlu0 1
        %486 = vperm.xlu0 %485, %v413
        %v487 = vpop.permute.xlu0 %486
        %489 = vset.pattern.permute.xlu0 1
        %490 = vperm.xlu0 %489, %v414
        %v491 = vpop.permute.xlu0 %490
        %493 = vset.pattern.permute.xlu0 1
        %494 = vperm.xlu0 %493, %v415
        %v495 = vpop.permute.xlu0 %494
        %v497 = vmul.f32 %v483, %v480
        %v498 = vmul.f32 %v487, %v480
        %v499 = vmul.f32 %v491, %v480
        %v500 = vmul.f32 %v495, %v480
        %v501 = vadd.f32 %v440, %v497
        %v502 = vadd.f32 %v441, %v498
        %v503 = vadd.f32 %v442, %v499
        %v504 = vadd.f32 %v443, %v500
        %v505 = vld [vmem:[%s4] sm:$0xff]
        %v506 = vld [vmem:[%s4 + $0x8] sm:$0xff]
        %v507 = vld [vmem:[%s4 + $0x10] sm:$0xff]
        %v508 = vld [vmem:[%s4 + $0x18] sm:$0xff]
        %510 = vset.pattern.permute.xlu0 0
        %511 = vperm.xlu0 %510, %v505
        %v512 = vpop.permute.xlu0 %511
        %515 = vset.pattern.permute.xlu0 0
        %516 = vperm.xlu0 %515, %v506
        %v517 = vpop.permute.xlu0 %516
        %520 = vset.pattern.permute.xlu0 0
        %521 = vperm.xlu0 %520, %v507
        %v522 = vpop.permute.xlu0 %521
        %525 = vset.pattern.permute.xlu0 0
        %526 = vperm.xlu0 %525, %v508
        %v527 = vpop.permute.xlu0 %526
        %v529 = vadd.f32 %v501, %v512
        %v530 = vadd.f32 %v502, %v517
        %v531 = vadd.f32 %v503, %v522
        %v532 = vadd.f32 %v504, %v527
        %537 = vrot.lane.b32.xlu0 %v529, 127
        %v538 = vpop.permute.xlu0 %537
        %539 = vrot.lane.b32.xlu0 %v530, 127
        %v540 = vpop.permute.xlu0 %539
        %541 = vrot.lane.b32.xlu0 %v531, 127
        %v542 = vpop.permute.xlu0 %541
        %543 = vrot.lane.b32.xlu0 %v532, 127
        %v544 = vpop.permute.xlu0 %543
        %v549 = vadd.f32 %v529, %v538
        %v550 = vadd.f32 %v530, %v540
        %v551 = vadd.f32 %v531, %v542
        %v552 = vadd.f32 %v532, %v544
        %v553 = vxor.u32 %v549, 2147483648
        %v554 = vxor.u32 %v550, 2147483648
        %v555 = vxor.u32 %v551, 2147483648
        %v556 = vxor.u32 %v552, 2147483648
        %v557 = vmul.f32 %v553, 1.442695
        %v558 = vpow.pop %v557
        %v559 = vmul.f32 %v554, 1.442695
        %v560 = vpow.pop %v559
        %v561 = vmul.f32 %v555, 1.442695
        %v562 = vpow.pop %v561
        %v563 = vmul.f32 %v556, 1.442695
        %v564 = vpow.pop %v563
        %v565 = vadd.f32 %v558, 1.0
        %v566 = vadd.f32 %v560, 1.0
        %v567 = vadd.f32 %v562, 1.0
        %v568 = vadd.f32 %v564, 1.0
        %v569 = vrcp.pop %v565
        %v570 = vmul.f32 1.0, %v569
        %v571 = vrcp.pop %v566
        %v572 = vmul.f32 1.0, %v571
        %v573 = vrcp.pop %v567
        %v574 = vmul.f32 1.0, %v573
        %v575 = vrcp.pop %v568
        %v576 = vmul.f32 1.0, %v575
        %578 = vset.pattern.permute.xlu0 0
        %579 = vperm.xlu0 %578, %v570
        %v580 = vpop.permute.xlu0 %579
        %583 = vset.pattern.permute.xlu0 0
        %584 = vperm.xlu0 %583, %v572
        %v585 = vpop.permute.xlu0 %584
        %588 = vset.pattern.permute.xlu0 0
        %589 = vperm.xlu0 %588, %v574
        %v590 = vpop.permute.xlu0 %589
        %593 = vset.pattern.permute.xlu0 0
        %594 = vperm.xlu0 %593, %v576
        %v595 = vpop.permute.xlu0 %594
        %v597 = vmul.f32 %v325, %v580
        %v598 = vmul.f32 %v326, %v580
        %v599 = vmul.f32 %v327, %v585
        %v600 = vmul.f32 %v328, %v585
        %v601 = vmul.f32 %v329, %v590
        %v602 = vmul.f32 %v330, %v590
        %v603 = vmul.f32 %v331, %v595
        %v604 = vmul.f32 %v332, %v595
        %v605 = vadd.f32 %v597, %v599
        %v606 = vadd.f32 %v605, %v601
        %v607 = vadd.f32 %v606, %v603
        %v608 = vrot.slane %v607, 4
        %v609 = vadd.f32 %v607, %v608
        %v610 = vrot.slane %v609, 2
        %v611 = vadd.f32 %v609, %v610
        %v612 = vrot.slane %v611, 1
        %v613 = vadd.f32 %v611, %v612
        %v614 = vadd.f32 %v598, %v600
        %v615 = vadd.f32 %v614, %v602
        %v616 = vadd.f32 %v615, %v604
        %v617 = vrot.slane %v616, 4
        %v618 = vadd.f32 %v616, %v617
        %v619 = vrot.slane %v618, 2
        %v620 = vadd.f32 %v618, %v619
        %v621 = vrot.slane %v620, 1
        %v622 = vadd.f32 %v620, %v621
        %v623 = vmul.f32 %v613, 0.03125
        %v624 = vmul.f32 %v622, 0.03125
        %v625 = vmax.f32 %v597, %v601
        %v626 = vmax.f32 %v599, %v603
        %v627 = vmax.f32 %v625, %v626
        %v628 = vrot.slane %v627, 4
        %v629 = vmax.f32 %v627, %v628
        %v630 = vrot.slane %v629, 2
        %v631 = vmax.f32 %v629, %v630
        %v632 = vrot.slane %v631, 1
        %v633 = vmax.f32 %v631, %v632
        %v634 = vmax.f32 %v598, %v602
        %v635 = vmax.f32 %v600, %v604
        %v636 = vmax.f32 %v634, %v635
        %v637 = vrot.slane %v636, 4
        %v638 = vmax.f32 %v636, %v637
        %v639 = vrot.slane %v638, 2
        %v640 = vmax.f32 %v638, %v639
        %v641 = vrot.slane %v640, 1
        %v642 = vmax.f32 %v640, %v641
        %645 = vrot.lane.b32.xlu0 %v623, 51
        %v646 = vpop.permute.xlu0 %645
        %647 = vrot.lane.b32.xlu0 %v624, 51
        %v648 = vpop.permute.xlu0 %647
        %vm649 = vcmask 416768
        %v650 = vsel %vm649, %v646, %v648
        %v654 = vsel %vm649, 0.0, %v646
        %v655 = vsel %vm649, %v648, 0.0
        %658 = vrot.lane.b32.xlu0 %v633, 51
        %v659 = vpop.permute.xlu0 %658
        %660 = vrot.lane.b32.xlu0 %v642, 51
        %v661 = vpop.permute.xlu0 %660
        %v662 = vsel %vm649, %v659, %v661
        %v666 = vsel %vm649, 0.0, %v659
        %v667 = vsel %vm649, %v661, 0.0
        %v668 = vlaneseq
        %v669 = vand.u32 %v668, 127
        %v670 = vadd.s32 %v669, 128
        %v671 = vand.u32 %v669, 15
        %v672 = vand.u32 %v670, 15
        %s673 = sld [smem:[#allocation8]]
        %v674 = vstv %s673
        %v675 = vmul.f32 %v674, %v654
        %v676 = vmul.f32 %v674, %v650
        %s677 = sld [smem:[#allocation8 + $0x31]]
        %v678 = vstv %s677
        %v679 = vmul.f32 %v678, %v666
        %v680 = vmul.f32 %v678, %v662
        %v681 = vadd.f32 %v675, %v679
        %v682 = vadd.f32 %v676, %v680
        %s683 = sld [smem:[#allocation8 + $0x7]]
        %v684 = vstv %s683
        %v685 = vmul.f32 %v684, %v654
        %v686 = vmul.f32 %v684, %v650
        %v687 = vmul.f32 %v684, %v655
        %s688 = sld [smem:[#allocation8 + $0x38]]
        %v689 = vstv %s688
        %v690 = vmul.f32 %v689, %v666
        %v691 = vmul.f32 %v689, %v662
        %v692 = vmul.f32 %v689, %v667
        %v693 = vadd.f32 %v685, %v690
        %v694 = vadd.f32 %v686, %v691
        %v695 = vadd.f32 %v687, %v692
        %699 = vrot.lane.b32.xlu0 %v693, 112
        %v700 = vpop.permute.xlu0 %699
        %701 = vrot.lane.b32.xlu0 %v694, 112
        %v702 = vpop.permute.xlu0 %701
        %703 = vrot.lane.b32.xlu0 %v695, 112
        %v704 = vpop.permute.xlu0 %703
        %vm705 = vcmask 916480
        %v706 = vsel %vm705, %v700, %v702
        %v707 = vsel %vm705, %v702, %v704
        %v710 = vadd.f32 %v681, %v706
        %v711 = vadd.f32 %v682, %v707
        %s712 = sld [smem:[#allocation8 + $0xe]]
        %v713 = vstv %s712
        %v714 = vmul.f32 %v713, %v654
        %v715 = vmul.f32 %v713, %v650
        %v716 = vmul.f32 %v713, %v655
        %s717 = sld [smem:[#allocation8 + $0x3f]]
        %v718 = vstv %s717
        %v719 = vmul.f32 %v718, %v666
        %v720 = vmul.f32 %v718, %v662
        %v721 = vmul.f32 %v718, %v667
        %v722 = vadd.f32 %v714, %v719
        %v723 = vadd.f32 %v715, %v720
        %v724 = vadd.f32 %v716, %v721
        %728 = vrot.lane.b32.xlu0 %v722, 96
        %v729 = vpop.permute.xlu0 %728
        %730 = vrot.lane.b32.xlu0 %v723, 96
        %v731 = vpop.permute.xlu0 %730
        %732 = vrot.lane.b32.xlu0 %v724, 96
        %v733 = vpop.permute.xlu0 %732
        %vm734 = vcmask 785408
        %v735 = vsel %vm734, %v729, %v731
        %v736 = vsel %vm734, %v731, %v733
        %v739 = vadd.f32 %v710, %v735
        %v740 = vadd.f32 %v711, %v736
        %s741 = sld [smem:[#allocation8 + $0x15]]
        %v742 = vstv %s741
        %v743 = vmul.f32 %v742, %v654
        %v744 = vmul.f32 %v742, %v650
        %v745 = vmul.f32 %v742, %v655
        %s746 = sld [smem:[#allocation8 + $0x46]]
        %v747 = vstv %s746
        %v748 = vmul.f32 %v747, %v666
        %v749 = vmul.f32 %v747, %v662
        %v750 = vmul.f32 %v747, %v667
        %v751 = vadd.f32 %v743, %v748
        %v752 = vadd.f32 %v744, %v749
        %v753 = vadd.f32 %v745, %v750
        %757 = vrot.lane.b32.xlu0 %v751, 80
        %v758 = vpop.permute.xlu0 %757
        %759 = vrot.lane.b32.xlu0 %v752, 80
        %v760 = vpop.permute.xlu0 %759
        %761 = vrot.lane.b32.xlu0 %v753, 80
        %v762 = vpop.permute.xlu0 %761
        %vm763 = vcmask 654336
        %v764 = vsel %vm763, %v758, %v760
        %v765 = vsel %vm763, %v760, %v762
        %v768 = vadd.f32 %v739, %v764
        %v769 = vadd.f32 %v740, %v765
        %s770 = sld [smem:[#allocation8 + $0x1c]]
        %v771 = vstv %s770
        %v772 = vmul.f32 %v771, %v654
        %v773 = vmul.f32 %v771, %v650
        %v774 = vmul.f32 %v771, %v655
        %s775 = sld [smem:[#allocation8 + $0x4d]]
        %v776 = vstv %s775
        %v777 = vmul.f32 %v776, %v666
        %v778 = vmul.f32 %v776, %v662
        %v779 = vmul.f32 %v776, %v667
        %v780 = vadd.f32 %v772, %v777
        %v781 = vadd.f32 %v773, %v778
        %v782 = vadd.f32 %v774, %v779
        %786 = vrot.lane.b32.xlu0 %v780, 64
        %v787 = vpop.permute.xlu0 %786
        %788 = vrot.lane.b32.xlu0 %v781, 64
        %v789 = vpop.permute.xlu0 %788
        %790 = vrot.lane.b32.xlu0 %v782, 64
        %v791 = vpop.permute.xlu0 %790
        %vm792 = vcmask 523264
        %v793 = vsel %vm792, %v787, %v789
        %v794 = vsel %vm792, %v789, %v791
        %v797 = vadd.f32 %v768, %v793
        %v798 = vadd.f32 %v769, %v794
        %s799 = sld [smem:[#allocation8 + $0x23]]
        %v800 = vstv %s799
        %v801 = vmul.f32 %v800, %v654
        %v802 = vmul.f32 %v800, %v650
        %v803 = vmul.f32 %v800, %v655
        %s804 = sld [smem:[#allocation8 + $0x54]]
        %v805 = vstv %s804
        %v806 = vmul.f32 %v805, %v666
        %v807 = vmul.f32 %v805, %v662
        %v808 = vmul.f32 %v805, %v667
        %v809 = vadd.f32 %v801, %v806
        %v810 = vadd.f32 %v802, %v807
        %v811 = vadd.f32 %v803, %v808
        %815 = vrot.lane.b32.xlu0 %v809, 48
        %v816 = vpop.permute.xlu0 %815
        %817 = vrot.lane.b32.xlu0 %v810, 48
        %v818 = vpop.permute.xlu0 %817
        %819 = vrot.lane.b32.xlu0 %v811, 48
        %v820 = vpop.permute.xlu0 %819
        %vm821 = vcmask 392192
        %v822 = vsel %vm821, %v816, %v818
        %v823 = vsel %vm821, %v818, %v820
        %v826 = vadd.f32 %v797, %v822
        %v827 = vadd.f32 %v798, %v823
        %s828 = sld [smem:[#allocation8 + $0x2a]]
        %v829 = vstv %s828
        %v830 = vmul.f32 %v829, %v654
        %v831 = vmul.f32 %v829, %v650
        %v832 = vmul.f32 %v829, %v655
        %s833 = sld [smem:[#allocation8 + $0x5b]]
        %v834 = vstv %s833
        %v835 = vmul.f32 %v834, %v666
        %v836 = vmul.f32 %v834, %v662
        %v837 = vmul.f32 %v834, %v667
        %v838 = vadd.f32 %v830, %v835
        %v839 = vadd.f32 %v831, %v836
        %v840 = vadd.f32 %v832, %v837
        %844 = vrot.lane.b32.xlu0 %v838, 32
        %v845 = vpop.permute.xlu0 %844
        %846 = vrot.lane.b32.xlu0 %v839, 32
        %v847 = vpop.permute.xlu0 %846
        %848 = vrot.lane.b32.xlu0 %v840, 32
        %v849 = vpop.permute.xlu0 %848
        %vm850 = vcmask 261120
        %v851 = vsel %vm850, %v845, %v847
        %v852 = vsel %vm850, %v847, %v849
        %v855 = vadd.f32 %v826, %v851
        %v856 = vadd.f32 %v827, %v852
        %vm857 = vcmp.ge.s32.totalorder %v671, 3
        %vm858 = vcmp.ge.s32.totalorder %v672, 3
        %vm859 = vcmp.lt.s32.totalorder %v671, 19
        %vm860 = vcmp.lt.s32.totalorder %v672, 19
        %vm861 = vmand %vm857, %vm859
        %vm862 = vmand %vm858, %vm860
        %v863 = vsel %vm861, %v855, 0.0
        %v864 = vsel %vm862, %v856, 0.0
        %v865 = vadd.f32 %v863, 0.0
        %v866 = vadd.f32 %v864, 0.0
        %s867 = sld [smem:[#allocation8 + $0x1]]
        %v868 = vstv %s867
        %v869 = vmul.f32 %v868, %v654
        %v870 = vmul.f32 %v868, %v650
        %v871 = vmul.f32 %v868, %v655
        %s872 = sld [smem:[#allocation8 + $0x32]]
        %v873 = vstv %s872
        %v874 = vmul.f32 %v873, %v666
        %v875 = vmul.f32 %v873, %v662
        %v876 = vmul.f32 %v873, %v667
        %v877 = vadd.f32 %v869, %v874
        %v878 = vadd.f32 %v870, %v875
        %v879 = vadd.f32 %v871, %v876
        %s880 = sld [smem:[#allocation8 + $0x8]]
        %v881 = vstv %s880
        %v882 = vmul.f32 %v881, %v654
        %v883 = vmul.f32 %v881, %v650
        %v884 = vmul.f32 %v881, %v655
        %s885 = sld [smem:[#allocation8 + $0x39]]
        %v886 = vstv %s885
        %v887 = vmul.f32 %v886, %v666
        %v888 = vmul.f32 %v886, %v662
        %v889 = vmul.f32 %v886, %v667
        %v890 = vadd.f32 %v882, %v887
        %v891 = vadd.f32 %v883, %v888
        %v892 = vadd.f32 %v884, %v889
        %896 = vrot.lane.b32.xlu0 %v890, 112
        %v897 = vpop.permute.xlu0 %896
        %898 = vrot.lane.b32.xlu0 %v891, 112
        %v899 = vpop.permute.xlu0 %898
        %900 = vrot.lane.b32.xlu0 %v892, 112
        %v901 = vpop.permute.xlu0 %900
        %v902 = vsel %vm705, %v897, %v899
        %v903 = vsel %vm705, %v899, %v901
        %v907 = vadd.f32 %v877, %v902
        %v908 = vadd.f32 %v878, %v903
        %v909 = vadd.f32 %v879, %v901
        %s910 = sld [smem:[#allocation8 + $0xf]]
        %v911 = vstv %s910
        %v912 = vmul.f32 %v911, %v654
        %v913 = vmul.f32 %v911, %v650
        %v914 = vmul.f32 %v911, %v655
        %s915 = sld [smem:[#allocation8 + $0x40]]
        %v916 = vstv %s915
        %v917 = vmul.f32 %v916, %v666
        %v918 = vmul.f32 %v916, %v662
        %v919 = vmul.f32 %v916, %v667
        %v920 = vadd.f32 %v912, %v917
        %v921 = vadd.f32 %v913, %v918
        %v922 = vadd.f32 %v914, %v919
        %926 = vrot.lane.b32.xlu0 %v920, 96
        %v927 = vpop.permute.xlu0 %926
        %928 = vrot.lane.b32.xlu0 %v921, 96
        %v929 = vpop.permute.xlu0 %928
        %930 = vrot.lane.b32.xlu0 %v922, 96
        %v931 = vpop.permute.xlu0 %930
        %v932 = vsel %vm734, %v927, %v929
        %v933 = vsel %vm734, %v929, %v931
        %v937 = vadd.f32 %v907, %v932
        %v938 = vadd.f32 %v908, %v933
        %v939 = vadd.f32 %v909, %v931
        %s940 = sld [smem:[#allocation8 + $0x16]]
        %v941 = vstv %s940
        %v942 = vmul.f32 %v941, %v654
        %v943 = vmul.f32 %v941, %v650
        %v944 = vmul.f32 %v941, %v655
        %s945 = sld [smem:[#allocation8 + $0x47]]
        %v946 = vstv %s945
        %v947 = vmul.f32 %v946, %v666
        %v948 = vmul.f32 %v946, %v662
        %v949 = vmul.f32 %v946, %v667
        %v950 = vadd.f32 %v942, %v947
        %v951 = vadd.f32 %v943, %v948
        %v952 = vadd.f32 %v944, %v949
        %956 = vrot.lane.b32.xlu0 %v950, 80
        %v957 = vpop.permute.xlu0 %956
        %958 = vrot.lane.b32.xlu0 %v951, 80
        %v959 = vpop.permute.xlu0 %958
        %960 = vrot.lane.b32.xlu0 %v952, 80
        %v961 = vpop.permute.xlu0 %960
        %v962 = vsel %vm763, %v957, %v959
        %v963 = vsel %vm763, %v959, %v961
        %v967 = vadd.f32 %v937, %v962
        %v968 = vadd.f32 %v938, %v963
        %v969 = vadd.f32 %v939, %v961
        %s970 = sld [smem:[#allocation8 + $0x1d]]
        %v971 = vstv %s970
        %v972 = vmul.f32 %v971, %v654
        %v973 = vmul.f32 %v971, %v650
        %v974 = vmul.f32 %v971, %v655
        %s975 = sld [smem:[#allocation8 + $0x4e]]
        %v976 = vstv %s975
        %v977 = vmul.f32 %v976, %v666
        %v978 = vmul.f32 %v976, %v662
        %v979 = vmul.f32 %v976, %v667
        %v980 = vadd.f32 %v972, %v977
        %v981 = vadd.f32 %v973, %v978
        %v982 = vadd.f32 %v974, %v979
        %986 = vrot.lane.b32.xlu0 %v980, 64
        %v987 = vpop.permute.xlu0 %986
        %988 = vrot.lane.b32.xlu0 %v981, 64
        %v989 = vpop.permute.xlu0 %988
        %990 = vrot.lane.b32.xlu0 %v982, 64
        %v991 = vpop.permute.xlu0 %990
        %v992 = vsel %vm792, %v987, %v989
        %v993 = vsel %vm792, %v989, %v991
        %v997 = vadd.f32 %v967, %v992
        %v998 = vadd.f32 %v968, %v993
        %v999 = vadd.f32 %v969, %v991
        %s1000 = sld [smem:[#allocation8 + $0x24]]
        %v1001 = vstv %s1000
        %v1002 = vmul.f32 %v1001, %v654
        %v1003 = vmul.f32 %v1001, %v650
        %v1004 = vmul.f32 %v1001, %v655
        %s1005 = sld [smem:[#allocation8 + $0x55]]
        %v1006 = vstv %s1005
        %v1007 = vmul.f32 %v1006, %v666
        %v1008 = vmul.f32 %v1006, %v662
        %v1009 = vmul.f32 %v1006, %v667
        %v1010 = vadd.f32 %v1002, %v1007
        %v1011 = vadd.f32 %v1003, %v1008
        %v1012 = vadd.f32 %v1004, %v1009
        %1016 = vrot.lane.b32.xlu0 %v1010, 48
        %v1017 = vpop.permute.xlu0 %1016
        %1018 = vrot.lane.b32.xlu0 %v1011, 48
        %v1019 = vpop.permute.xlu0 %1018
        %1020 = vrot.lane.b32.xlu0 %v1012, 48
        %v1021 = vpop.permute.xlu0 %1020
        %v1022 = vsel %vm821, %v1017, %v1019
        %v1023 = vsel %vm821, %v1019, %v1021
        %v1027 = vadd.f32 %v997, %v1022
        %v1028 = vadd.f32 %v998, %v1023
        %v1029 = vadd.f32 %v999, %v1021
        %s1030 = sld [smem:[#allocation8 + $0x2b]]
        %v1031 = vstv %s1030
        %v1032 = vmul.f32 %v1031, %v654
        %v1033 = vmul.f32 %v1031, %v650
        %v1034 = vmul.f32 %v1031, %v655
        %s1035 = sld [smem:[#allocation8 + $0x5c]]
        %v1036 = vstv %s1035
        %v1037 = vmul.f32 %v1036, %v666
        %v1038 = vmul.f32 %v1036, %v662
        %v1039 = vmul.f32 %v1036, %v667
        %v1040 = vadd.f32 %v1032, %v1037
        %v1041 = vadd.f32 %v1033, %v1038
        %v1042 = vadd.f32 %v1034, %v1039
        %1046 = vrot.lane.b32.xlu0 %v1040, 32
        %v1047 = vpop.permute.xlu0 %1046
        %1048 = vrot.lane.b32.xlu0 %v1041, 32
        %v1049 = vpop.permute.xlu0 %1048
        %1050 = vrot.lane.b32.xlu0 %v1042, 32
        %v1051 = vpop.permute.xlu0 %1050
        %v1052 = vsel %vm850, %v1047, %v1049
        %v1053 = vsel %vm850, %v1049, %v1051
        %v1057 = vadd.f32 %v1027, %v1052
        %v1058 = vadd.f32 %v1028, %v1053
        %v1059 = vadd.f32 %v1029, %v1051
        %vm1060 = vcmp.ge.s32.totalorder %v671, 2
        %vm1061 = vcmp.ge.s32.totalorder %v672, 2
        %vm1062 = vcmp.lt.s32.totalorder %v671, 18
        %vm1063 = vcmp.lt.s32.totalorder %v672, 18
        %vm1064 = vmand %vm1060, %vm1062
        %vm1065 = vmand %vm1061, %vm1063
        %1069 = vrot.lane.b32.xlu0 %v1057, 127
        %v1070 = vpop.permute.xlu0 %1069
        %1071 = vrot.lane.b32.xlu0 %v1058, 127
        %v1072 = vpop.permute.xlu0 %1071
        %1073 = vrot.lane.b32.xlu0 %v1059, 127
        %v1074 = vpop.permute.xlu0 %1073
        %vm1075 = vcmask 1039360
        %v1076 = vsel %vm1075, %v1070, %v1072
        %v1077 = vsel %vm1075, %v1072, %v1074
        %v1080 = vsel %vm1064, %v1076, 0.0
        %v1081 = vsel %vm1065, %v1077, 0.0
        %v1082 = vadd.f32 %v865, %v1080
        %v1083 = vadd.f32 %v866, %v1081
        %s1084 = sld [smem:[#allocation8 + $0x2]]
        %v1085 = vstv %s1084
        %v1086 = vmul.f32 %v1085, %v654
        %v1087 = vmul.f32 %v1085, %v650
        %v1088 = vmul.f32 %v1085, %v655
        %s1089 = sld [smem:[#allocation8 + $0x33]]
        %v1090 = vstv %s1089
        %v1091 = vmul.f32 %v1090, %v666
        %v1092 = vmul.f32 %v1090, %v662
        %v1093 = vmul.f32 %v1090, %v667
        %v1094 = vadd.f32 %v1086, %v1091
        %v1095 = vadd.f32 %v1087, %v1092
        %v1096 = vadd.f32 %v1088, %v1093
        %s1097 = sld [smem:[#allocation8 + $0x9]]
        %v1098 = vstv %s1097
        %v1099 = vmul.f32 %v1098, %v654
        %v1100 = vmul.f32 %v1098, %v650
        %v1101 = vmul.f32 %v1098, %v655
        %s1102 = sld [smem:[#allocation8 + $0x3a]]
        %v1103 = vstv %s1102
        %v1104 = vmul.f32 %v1103, %v666
        %v1105 = vmul.f32 %v1103, %v662
        %v1106 = vmul.f32 %v1103, %v667
        %v1107 = vadd.f32 %v1099, %v1104
        %v1108 = vadd.f32 %v1100, %v1105
        %v1109 = vadd.f32 %v1101, %v1106
        %1113 = vrot.lane.b32.xlu0 %v1107, 112
        %v1114 = vpop.permute.xlu0 %1113
        %1115 = vrot.lane.b32.xlu0 %v1108, 112
        %v1116 = vpop.permute.xlu0 %1115
        %1117 = vrot.lane.b32.xlu0 %v1109, 112
        %v1118 = vpop.permute.xlu0 %1117
        %v1119 = vsel %vm705, %v1114, %v1116
        %v1120 = vsel %vm705, %v1116, %v1118
        %v1124 = vadd.f32 %v1094, %v1119
        %v1125 = vadd.f32 %v1095, %v1120
        %v1126 = vadd.f32 %v1096, %v1118
        %s1127 = sld [smem:[#allocation8 + $0x10]]
        %v1128 = vstv %s1127
        %v1129 = vmul.f32 %v1128, %v654
        %v1130 = vmul.f32 %v1128, %v650
        %v1131 = vmul.f32 %v1128, %v655
        %s1132 = sld [smem:[#allocation8 + $0x41]]
        %v1133 = vstv %s1132
        %v1134 = vmul.f32 %v1133, %v666
        %v1135 = vmul.f32 %v1133, %v662
        %v1136 = vmul.f32 %v1133, %v667
        %v1137 = vadd.f32 %v1129, %v1134
        %v1138 = vadd.f32 %v1130, %v1135
        %v1139 = vadd.f32 %v1131, %v1136
        %1143 = vrot.lane.b32.xlu0 %v1137, 96
        %v1144 = vpop.permute.xlu0 %1143
        %1145 = vrot.lane.b32.xlu0 %v1138, 96
        %v1146 = vpop.permute.xlu0 %1145
        %1147 = vrot.lane.b32.xlu0 %v1139, 96
        %v1148 = vpop.permute.xlu0 %1147
        %v1149 = vsel %vm734, %v1144, %v1146
        %v1150 = vsel %vm734, %v1146, %v1148
        %v1154 = vadd.f32 %v1124, %v1149
        %v1155 = vadd.f32 %v1125, %v1150
        %v1156 = vadd.f32 %v1126, %v1148
        %s1157 = sld [smem:[#allocation8 + $0x17]]
        %v1158 = vstv %s1157
        %v1159 = vmul.f32 %v1158, %v654
        %v1160 = vmul.f32 %v1158, %v650
        %v1161 = vmul.f32 %v1158, %v655
        %s1162 = sld [smem:[#allocation8 + $0x48]]
        %v1163 = vstv %s1162
        %v1164 = vmul.f32 %v1163, %v666
        %v1165 = vmul.f32 %v1163, %v662
        %v1166 = vmul.f32 %v1163, %v667
        %v1167 = vadd.f32 %v1159, %v1164
        %v1168 = vadd.f32 %v1160, %v1165
        %v1169 = vadd.f32 %v1161, %v1166
        %1173 = vrot.lane.b32.xlu0 %v1167, 80
        %v1174 = vpop.permute.xlu0 %1173
        %1175 = vrot.lane.b32.xlu0 %v1168, 80
        %v1176 = vpop.permute.xlu0 %1175
        %1177 = vrot.lane.b32.xlu0 %v1169, 80
        %v1178 = vpop.permute.xlu0 %1177
        %v1179 = vsel %vm763, %v1174, %v1176
        %v1180 = vsel %vm763, %v1176, %v1178
        %v1184 = vadd.f32 %v1154, %v1179
        %v1185 = vadd.f32 %v1155, %v1180
        %v1186 = vadd.f32 %v1156, %v1178
        %s1187 = sld [smem:[#allocation8 + $0x1e]]
        %v1188 = vstv %s1187
        %v1189 = vmul.f32 %v1188, %v654
        %v1190 = vmul.f32 %v1188, %v650
        %v1191 = vmul.f32 %v1188, %v655
        %s1192 = sld [smem:[#allocation8 + $0x4f]]
        %v1193 = vstv %s1192
        %v1194 = vmul.f32 %v1193, %v666
        %v1195 = vmul.f32 %v1193, %v662
        %v1196 = vmul.f32 %v1193, %v667
        %v1197 = vadd.f32 %v1189, %v1194
        %v1198 = vadd.f32 %v1190, %v1195
        %v1199 = vadd.f32 %v1191, %v1196
        %1203 = vrot.lane.b32.xlu0 %v1197, 64
        %v1204 = vpop.permute.xlu0 %1203
        %1205 = vrot.lane.b32.xlu0 %v1198, 64
        %v1206 = vpop.permute.xlu0 %1205
        %1207 = vrot.lane.b32.xlu0 %v1199, 64
        %v1208 = vpop.permute.xlu0 %1207
        %v1209 = vsel %vm792, %v1204, %v1206
        %v1210 = vsel %vm792, %v1206, %v1208
        %v1214 = vadd.f32 %v1184, %v1209
        %v1215 = vadd.f32 %v1185, %v1210
        %v1216 = vadd.f32 %v1186, %v1208
        %s1217 = sld [smem:[#allocation8 + $0x25]]
        %v1218 = vstv %s1217
        %v1219 = vmul.f32 %v1218, %v654
        %v1220 = vmul.f32 %v1218, %v650
        %v1221 = vmul.f32 %v1218, %v655
        %s1222 = sld [smem:[#allocation8 + $0x56]]
        %v1223 = vstv %s1222
        %v1224 = vmul.f32 %v1223, %v666
        %v1225 = vmul.f32 %v1223, %v662
        %v1226 = vmul.f32 %v1223, %v667
        %v1227 = vadd.f32 %v1219, %v1224
        %v1228 = vadd.f32 %v1220, %v1225
        %v1229 = vadd.f32 %v1221, %v1226
        %1233 = vrot.lane.b32.xlu0 %v1227, 48
        %v1234 = vpop.permute.xlu0 %1233
        %1235 = vrot.lane.b32.xlu0 %v1228, 48
        %v1236 = vpop.permute.xlu0 %1235
        %1237 = vrot.lane.b32.xlu0 %v1229, 48
        %v1238 = vpop.permute.xlu0 %1237
        %v1239 = vsel %vm821, %v1234, %v1236
        %v1240 = vsel %vm821, %v1236, %v1238
        %v1244 = vadd.f32 %v1214, %v1239
        %v1245 = vadd.f32 %v1215, %v1240
        %v1246 = vadd.f32 %v1216, %v1238
        %s1247 = sld [smem:[#allocation8 + $0x2c]]
        %v1248 = vstv %s1247
        %v1249 = vmul.f32 %v1248, %v654
        %v1250 = vmul.f32 %v1248, %v650
        %v1251 = vmul.f32 %v1248, %v655
        %s1252 = sld [smem:[#allocation8 + $0x5d]]
        %v1253 = vstv %s1252
        %v1254 = vmul.f32 %v1253, %v666
        %v1255 = vmul.f32 %v1253, %v662
        %v1256 = vmul.f32 %v1253, %v667
        %v1257 = vadd.f32 %v1249, %v1254
        %v1258 = vadd.f32 %v1250, %v1255
        %v1259 = vadd.f32 %v1251, %v1256
        %1263 = vrot.lane.b32.xlu0 %v1257, 32
        %v1264 = vpop.permute.xlu0 %1263
        %1265 = vrot.lane.b32.xlu0 %v1258, 32
        %v1266 = vpop.permute.xlu0 %1265
        %1267 = vrot.lane.b32.xlu0 %v1259, 32
        %v1268 = vpop.permute.xlu0 %1267
        %v1269 = vsel %vm850, %v1264, %v1266
        %v1270 = vsel %vm850, %v1266, %v1268
        %v1274 = vadd.f32 %v1244, %v1269
        %v1275 = vadd.f32 %v1245, %v1270
        %v1276 = vadd.f32 %v1246, %v1268
        %vm1277 = vcmp.ge.s32.totalorder %v671, 1
        %vm1278 = vcmp.ge.s32.totalorder %v672, 1
        %vm1279 = vcmp.lt.s32.totalorder %v671, 17
        %vm1280 = vcmp.lt.s32.totalorder %v672, 17
        %vm1281 = vmand %vm1277, %vm1279
        %vm1282 = vmand %vm1278, %vm1280
        %1286 = vrot.lane.b32.xlu0 %v1274, 126
        %v1287 = vpop.permute.xlu0 %1286
        %1288 = vrot.lane.b32.xlu0 %v1275, 126
        %v1289 = vpop.permute.xlu0 %1288
        %1290 = vrot.lane.b32.xlu0 %v1276, 126
        %v1291 = vpop.permute.xlu0 %1290
        %vm1292 = vcmask 1031168
        %v1293 = vsel %vm1292, %v1287, %v1289
        %v1294 = vsel %vm1292, %v1289, %v1291
        %v1297 = vsel %vm1281, %v1293, 0.0
        %v1298 = vsel %vm1282, %v1294, 0.0
        %v1299 = vadd.f32 %v1082, %v1297
        %v1300 = vadd.f32 %v1083, %v1298
        %s1301 = sld [smem:[#allocation8 + $0x3]]
        %v1302 = vstv %s1301
        %v1303 = vmul.f32 %v1302, %v654
        %v1304 = vmul.f32 %v1302, %v650
        %v1305 = vmul.f32 %v1302, %v655
        %s1306 = sld [smem:[#allocation8 + $0x34]]
        %v1307 = vstv %s1306
        %v1308 = vmul.f32 %v1307, %v666
        %v1309 = vmul.f32 %v1307, %v662
        %v1310 = vmul.f32 %v1307, %v667
        %v1311 = vadd.f32 %v1303, %v1308
        %v1312 = vadd.f32 %v1304, %v1309
        %v1313 = vadd.f32 %v1305, %v1310
        %s1314 = sld [smem:[#allocation8 + $0xa]]
        %v1315 = vstv %s1314
        %v1316 = vmul.f32 %v1315, %v654
        %v1317 = vmul.f32 %v1315, %v650
        %v1318 = vmul.f32 %v1315, %v655
        %s1319 = sld [smem:[#allocation8 + $0x3b]]
        %v1320 = vstv %s1319
        %v1321 = vmul.f32 %v1320, %v666
        %v1322 = vmul.f32 %v1320, %v662
        %v1323 = vmul.f32 %v1320, %v667
        %v1324 = vadd.f32 %v1316, %v1321
        %v1325 = vadd.f32 %v1317, %v1322
        %v1326 = vadd.f32 %v1318, %v1323
        %1330 = vrot.lane.b32.xlu0 %v1324, 112
        %v1331 = vpop.permute.xlu0 %1330
        %1332 = vrot.lane.b32.xlu0 %v1325, 112
        %v1333 = vpop.permute.xlu0 %1332
        %1334 = vrot.lane.b32.xlu0 %v1326, 112
        %v1335 = vpop.permute.xlu0 %1334
        %v1336 = vsel %vm705, %v1331, %v1333
        %v1337 = vsel %vm705, %v1333, %v1335
        %v1341 = vadd.f32 %v1311, %v1336
        %v1342 = vadd.f32 %v1312, %v1337
        %v1343 = vadd.f32 %v1313, %v1335
        %s1344 = sld [smem:[#allocation8 + $0x11]]
        %v1345 = vstv %s1344
        %v1346 = vmul.f32 %v1345, %v654
        %v1347 = vmul.f32 %v1345, %v650
        %v1348 = vmul.f32 %v1345, %v655
        %s1349 = sld [smem:[#allocation8 + $0x42]]
        %v1350 = vstv %s1349
        %v1351 = vmul.f32 %v1350, %v666
        %v1352 = vmul.f32 %v1350, %v662
        %v1353 = vmul.f32 %v1350, %v667
        %v1354 = vadd.f32 %v1346, %v1351
        %v1355 = vadd.f32 %v1347, %v1352
        %v1356 = vadd.f32 %v1348, %v1353
        %1360 = vrot.lane.b32.xlu0 %v1354, 96
        %v1361 = vpop.permute.xlu0 %1360
        %1362 = vrot.lane.b32.xlu0 %v1355, 96
        %v1363 = vpop.permute.xlu0 %1362
        %1364 = vrot.lane.b32.xlu0 %v1356, 96
        %v1365 = vpop.permute.xlu0 %1364
        %v1366 = vsel %vm734, %v1361, %v1363
        %v1367 = vsel %vm734, %v1363, %v1365
        %v1371 = vadd.f32 %v1341, %v1366
        %v1372 = vadd.f32 %v1342, %v1367
        %v1373 = vadd.f32 %v1343, %v1365
        %s1374 = sld [smem:[#allocation8 + $0x18]]
        %v1375 = vstv %s1374
        %v1376 = vmul.f32 %v1375, %v654
        %v1377 = vmul.f32 %v1375, %v650
        %v1378 = vmul.f32 %v1375, %v655
        %s1379 = sld [smem:[#allocation8 + $0x49]]
        %v1380 = vstv %s1379
        %v1381 = vmul.f32 %v1380, %v666
        %v1382 = vmul.f32 %v1380, %v662
        %v1383 = vmul.f32 %v1380, %v667
        %v1384 = vadd.f32 %v1376, %v1381
        %v1385 = vadd.f32 %v1377, %v1382
        %v1386 = vadd.f32 %v1378, %v1383
        %1390 = vrot.lane.b32.xlu0 %v1384, 80
        %v1391 = vpop.permute.xlu0 %1390
        %1392 = vrot.lane.b32.xlu0 %v1385, 80
        %v1393 = vpop.permute.xlu0 %1392
        %1394 = vrot.lane.b32.xlu0 %v1386, 80
        %v1395 = vpop.permute.xlu0 %1394
        %v1396 = vsel %vm763, %v1391, %v1393
        %v1397 = vsel %vm763, %v1393, %v1395
        %v1401 = vadd.f32 %v1371, %v1396
        %v1402 = vadd.f32 %v1372, %v1397
        %v1403 = vadd.f32 %v1373, %v1395
        %s1404 = sld [smem:[#allocation8 + $0x1f]]
        %v1405 = vstv %s1404
        %v1406 = vmul.f32 %v1405, %v654
        %v1407 = vmul.f32 %v1405, %v650
        %v1408 = vmul.f32 %v1405, %v655
        %s1409 = sld [smem:[#allocation8 + $0x50]]
        %v1410 = vstv %s1409
        %v1411 = vmul.f32 %v1410, %v666
        %v1412 = vmul.f32 %v1410, %v662
        %v1413 = vmul.f32 %v1410, %v667
        %v1414 = vadd.f32 %v1406, %v1411
        %v1415 = vadd.f32 %v1407, %v1412
        %v1416 = vadd.f32 %v1408, %v1413
        %1420 = vrot.lane.b32.xlu0 %v1414, 64
        %v1421 = vpop.permute.xlu0 %1420
        %1422 = vrot.lane.b32.xlu0 %v1415, 64
        %v1423 = vpop.permute.xlu0 %1422
        %1424 = vrot.lane.b32.xlu0 %v1416, 64
        %v1425 = vpop.permute.xlu0 %1424
        %v1426 = vsel %vm792, %v1421, %v1423
        %v1427 = vsel %vm792, %v1423, %v1425
        %v1431 = vadd.f32 %v1401, %v1426
        %v1432 = vadd.f32 %v1402, %v1427
        %v1433 = vadd.f32 %v1403, %v1425
        %s1434 = sld [smem:[#allocation8 + $0x26]]
        %v1435 = vstv %s1434
        %v1436 = vmul.f32 %v1435, %v654
        %v1437 = vmul.f32 %v1435, %v650
        %v1438 = vmul.f32 %v1435, %v655
        %s1439 = sld [smem:[#allocation8 + $0x57]]
        %v1440 = vstv %s1439
        %v1441 = vmul.f32 %v1440, %v666
        %v1442 = vmul.f32 %v1440, %v662
        %v1443 = vmul.f32 %v1440, %v667
        %v1444 = vadd.f32 %v1436, %v1441
        %v1445 = vadd.f32 %v1437, %v1442
        %v1446 = vadd.f32 %v1438, %v1443
        %1450 = vrot.lane.b32.xlu0 %v1444, 48
        %v1451 = vpop.permute.xlu0 %1450
        %1452 = vrot.lane.b32.xlu0 %v1445, 48
        %v1453 = vpop.permute.xlu0 %1452
        %1454 = vrot.lane.b32.xlu0 %v1446, 48
        %v1455 = vpop.permute.xlu0 %1454
        %v1456 = vsel %vm821, %v1451, %v1453
        %v1457 = vsel %vm821, %v1453, %v1455
        %v1461 = vadd.f32 %v1431, %v1456
        %v1462 = vadd.f32 %v1432, %v1457
        %v1463 = vadd.f32 %v1433, %v1455
        %s1464 = sld [smem:[#allocation8 + $0x2d]]
        %v1465 = vstv %s1464
        %v1466 = vmul.f32 %v1465, %v654
        %v1467 = vmul.f32 %v1465, %v650
        %v1468 = vmul.f32 %v1465, %v655
        %s1469 = sld [smem:[#allocation8 + $0x5e]]
        %v1470 = vstv %s1469
        %v1471 = vmul.f32 %v1470, %v666
        %v1472 = vmul.f32 %v1470, %v662
        %v1473 = vmul.f32 %v1470, %v667
        %v1474 = vadd.f32 %v1466, %v1471
        %v1475 = vadd.f32 %v1467, %v1472
        %v1476 = vadd.f32 %v1468, %v1473
        %1480 = vrot.lane.b32.xlu0 %v1474, 32
        %v1481 = vpop.permute.xlu0 %1480
        %1482 = vrot.lane.b32.xlu0 %v1475, 32
        %v1483 = vpop.permute.xlu0 %1482
        %1484 = vrot.lane.b32.xlu0 %v1476, 32
        %v1485 = vpop.permute.xlu0 %1484
        %v1486 = vsel %vm850, %v1481, %v1483
        %v1487 = vsel %vm850, %v1483, %v1485
        %v1491 = vadd.f32 %v1461, %v1486
        %v1492 = vadd.f32 %v1462, %v1487
        %v1493 = vadd.f32 %v1463, %v1485
        %1497 = vrot.lane.b32.xlu0 %v1491, 125
        %v1498 = vpop.permute.xlu0 %1497
        %1499 = vrot.lane.b32.xlu0 %v1492, 125
        %v1500 = vpop.permute.xlu0 %1499
        %1501 = vrot.lane.b32.xlu0 %v1493, 125
        %v1502 = vpop.permute.xlu0 %1501
        %vm1503 = vcmask 1022976
        %v1504 = vsel %vm1503, %v1498, %v1500
        %v1505 = vsel %vm1503, %v1500, %v1502
        %v1508 = vadd.f32 %v1299, %v1504
        %v1509 = vadd.f32 %v1300, %v1505
        %s1510 = sld [smem:[#allocation8 + $0x4]]
        %v1511 = vstv %s1510
        %v1512 = vmul.f32 %v1511, %v654
        %v1513 = vmul.f32 %v1511, %v650
        %v1514 = vmul.f32 %v1511, %v655
        %s1515 = sld [smem:[#allocation8 + $0x35]]
        %v1516 = vstv %s1515
        %v1517 = vmul.f32 %v1516, %v666
        %v1518 = vmul.f32 %v1516, %v662
        %v1519 = vmul.f32 %v1516, %v667
        %v1520 = vadd.f32 %v1512, %v1517
        %v1521 = vadd.f32 %v1513, %v1518
        %v1522 = vadd.f32 %v1514, %v1519
        %s1523 = sld [smem:[#allocation8 + $0xb]]
        %v1524 = vstv %s1523
        %v1525 = vmul.f32 %v1524, %v654
        %v1526 = vmul.f32 %v1524, %v650
        %v1527 = vmul.f32 %v1524, %v655
        %s1528 = sld [smem:[#allocation8 + $0x3c]]
        %v1529 = vstv %s1528
        %v1530 = vmul.f32 %v1529, %v666
        %v1531 = vmul.f32 %v1529, %v662
        %v1532 = vmul.f32 %v1529, %v667
        %v1533 = vadd.f32 %v1525, %v1530
        %v1534 = vadd.f32 %v1526, %v1531
        %v1535 = vadd.f32 %v1527, %v1532
        %1539 = vrot.lane.b32.xlu0 %v1533, 112
        %v1540 = vpop.permute.xlu0 %1539
        %1541 = vrot.lane.b32.xlu0 %v1534, 112
        %v1542 = vpop.permute.xlu0 %1541
        %1543 = vrot.lane.b32.xlu0 %v1535, 112
        %v1544 = vpop.permute.xlu0 %1543
        %v1545 = vsel %vm705, %v1540, %v1542
        %v1546 = vsel %vm705, %v1542, %v1544
        %v1550 = vadd.f32 %v1520, %v1545
        %v1551 = vadd.f32 %v1521, %v1546
        %v1552 = vadd.f32 %v1522, %v1544
        %s1553 = sld [smem:[#allocation8 + $0x12]]
        %v1554 = vstv %s1553
        %v1555 = vmul.f32 %v1554, %v654
        %v1556 = vmul.f32 %v1554, %v650
        %v1557 = vmul.f32 %v1554, %v655
        %s1558 = sld [smem:[#allocation8 + $0x43]]
        %v1559 = vstv %s1558
        %v1560 = vmul.f32 %v1559, %v666
        %v1561 = vmul.f32 %v1559, %v662
        %v1562 = vmul.f32 %v1559, %v667
        %v1563 = vadd.f32 %v1555, %v1560
        %v1564 = vadd.f32 %v1556, %v1561
        %v1565 = vadd.f32 %v1557, %v1562
        %1569 = vrot.lane.b32.xlu0 %v1563, 96
        %v1570 = vpop.permute.xlu0 %1569
        %1571 = vrot.lane.b32.xlu0 %v1564, 96
        %v1572 = vpop.permute.xlu0 %1571
        %1573 = vrot.lane.b32.xlu0 %v1565, 96
        %v1574 = vpop.permute.xlu0 %1573
        %v1575 = vsel %vm734, %v1570, %v1572
        %v1576 = vsel %vm734, %v1572, %v1574
        %v1580 = vadd.f32 %v1550, %v1575
        %v1581 = vadd.f32 %v1551, %v1576
        %v1582 = vadd.f32 %v1552, %v1574
        %s1583 = sld [smem:[#allocation8 + $0x19]]
        %v1584 = vstv %s1583
        %v1585 = vmul.f32 %v1584, %v654
        %v1586 = vmul.f32 %v1584, %v650
        %v1587 = vmul.f32 %v1584, %v655
        %s1588 = sld [smem:[#allocation8 + $0x4a]]
        %v1589 = vstv %s1588
        %v1590 = vmul.f32 %v1589, %v666
        %v1591 = vmul.f32 %v1589, %v662
        %v1592 = vmul.f32 %v1589, %v667
        %v1593 = vadd.f32 %v1585, %v1590
        %v1594 = vadd.f32 %v1586, %v1591
        %v1595 = vadd.f32 %v1587, %v1592
        %1599 = vrot.lane.b32.xlu0 %v1593, 80
        %v1600 = vpop.permute.xlu0 %1599
        %1601 = vrot.lane.b32.xlu0 %v1594, 80
        %v1602 = vpop.permute.xlu0 %1601
        %1603 = vrot.lane.b32.xlu0 %v1595, 80
        %v1604 = vpop.permute.xlu0 %1603
        %v1605 = vsel %vm763, %v1600, %v1602
        %v1606 = vsel %vm763, %v1602, %v1604
        %v1610 = vadd.f32 %v1580, %v1605
        %v1611 = vadd.f32 %v1581, %v1606
        %v1612 = vadd.f32 %v1582, %v1604
        %s1613 = sld [smem:[#allocation8 + $0x20]]
        %v1614 = vstv %s1613
        %v1615 = vmul.f32 %v1614, %v654
        %v1616 = vmul.f32 %v1614, %v650
        %v1617 = vmul.f32 %v1614, %v655
        %s1618 = sld [smem:[#allocation8 + $0x51]]
        %v1619 = vstv %s1618
        %v1620 = vmul.f32 %v1619, %v666
        %v1621 = vmul.f32 %v1619, %v662
        %v1622 = vmul.f32 %v1619, %v667
        %v1623 = vadd.f32 %v1615, %v1620
        %v1624 = vadd.f32 %v1616, %v1621
        %v1625 = vadd.f32 %v1617, %v1622
        %1629 = vrot.lane.b32.xlu0 %v1623, 64
        %v1630 = vpop.permute.xlu0 %1629
        %1631 = vrot.lane.b32.xlu0 %v1624, 64
        %v1632 = vpop.permute.xlu0 %1631
        %1633 = vrot.lane.b32.xlu0 %v1625, 64
        %v1634 = vpop.permute.xlu0 %1633
        %v1635 = vsel %vm792, %v1630, %v1632
        %v1636 = vsel %vm792, %v1632, %v1634
        %v1640 = vadd.f32 %v1610, %v1635
        %v1641 = vadd.f32 %v1611, %v1636
        %v1642 = vadd.f32 %v1612, %v1634
        %s1643 = sld [smem:[#allocation8 + $0x27]]
        %v1644 = vstv %s1643
        %v1645 = vmul.f32 %v1644, %v654
        %v1646 = vmul.f32 %v1644, %v650
        %v1647 = vmul.f32 %v1644, %v655
        %s1648 = sld [smem:[#allocation8 + $0x58]]
        %v1649 = vstv %s1648
        %v1650 = vmul.f32 %v1649, %v666
        %v1651 = vmul.f32 %v1649, %v662
        %v1652 = vmul.f32 %v1649, %v667
        %v1653 = vadd.f32 %v1645, %v1650
        %v1654 = vadd.f32 %v1646, %v1651
        %v1655 = vadd.f32 %v1647, %v1652
        %1659 = vrot.lane.b32.xlu0 %v1653, 48
        %v1660 = vpop.permute.xlu0 %1659
        %1661 = vrot.lane.b32.xlu0 %v1654, 48
        %v1662 = vpop.permute.xlu0 %1661
        %1663 = vrot.lane.b32.xlu0 %v1655, 48
        %v1664 = vpop.permute.xlu0 %1663
        %v1665 = vsel %vm821, %v1660, %v1662
        %v1666 = vsel %vm821, %v1662, %v1664
        %v1670 = vadd.f32 %v1640, %v1665
        %v1671 = vadd.f32 %v1641, %v1666
        %v1672 = vadd.f32 %v1642, %v1664
        %s1673 = sld [smem:[#allocation8 + $0x2e]]
        %v1674 = vstv %s1673
        %v1675 = vmul.f32 %v1674, %v654
        %v1676 = vmul.f32 %v1674, %v650
        %v1677 = vmul.f32 %v1674, %v655
        %s1678 = sld [smem:[#allocation8 + $0x5f]]
        %v1679 = vstv %s1678
        %v1680 = vmul.f32 %v1679, %v666
        %v1681 = vmul.f32 %v1679, %v662
        %v1682 = vmul.f32 %v1679, %v667
        %v1683 = vadd.f32 %v1675, %v1680
        %v1684 = vadd.f32 %v1676, %v1681
        %v1685 = vadd.f32 %v1677, %v1682
        %1689 = vrot.lane.b32.xlu0 %v1683, 32
        %v1690 = vpop.permute.xlu0 %1689
        %1691 = vrot.lane.b32.xlu0 %v1684, 32
        %v1692 = vpop.permute.xlu0 %1691
        %1693 = vrot.lane.b32.xlu0 %v1685, 32
        %v1694 = vpop.permute.xlu0 %1693
        %v1695 = vsel %vm850, %v1690, %v1692
        %v1696 = vsel %vm850, %v1692, %v1694
        %v1700 = vadd.f32 %v1670, %v1695
        %v1701 = vadd.f32 %v1671, %v1696
        %v1702 = vadd.f32 %v1672, %v1694
        %vm1703 = vcmp.ge.s32.totalorder %v671, 4294967295
        %vm1704 = vcmp.ge.s32.totalorder %v672, 4294967295
        %vm1705 = vcmp.lt.s32.totalorder %v671, 15
        %vm1706 = vcmp.lt.s32.totalorder %v672, 15
        %vm1707 = vmand %vm1703, %vm1705
        %vm1708 = vmand %vm1704, %vm1706
        %1712 = vrot.lane.b32.xlu0 %v1700, 124
        %v1713 = vpop.permute.xlu0 %1712
        %1714 = vrot.lane.b32.xlu0 %v1701, 124
        %v1715 = vpop.permute.xlu0 %1714
        %1716 = vrot.lane.b32.xlu0 %v1702, 124
        %v1717 = vpop.permute.xlu0 %1716
        %vm1718 = vcmask 1014784
        %v1719 = vsel %vm1718, %v1713, %v1715
        %v1720 = vsel %vm1718, %v1715, %v1717
        %v1723 = vsel %vm1707, %v1719, 0.0
        %v1724 = vsel %vm1708, %v1720, 0.0
        %v1725 = vadd.f32 %v1508, %v1723
        %v1726 = vadd.f32 %v1509, %v1724
        %s1727 = sld [smem:[#allocation8 + $0x5]]
        %v1728 = vstv %s1727
        %v1729 = vmul.f32 %v1728, %v654
        %v1730 = vmul.f32 %v1728, %v650
        %v1731 = vmul.f32 %v1728, %v655
        %s1732 = sld [smem:[#allocation8 + $0x36]]
        %v1733 = vstv %s1732
        %v1734 = vmul.f32 %v1733, %v666
        %v1735 = vmul.f32 %v1733, %v662
        %v1736 = vmul.f32 %v1733, %v667
        %v1737 = vadd.f32 %v1729, %v1734
        %v1738 = vadd.f32 %v1730, %v1735
        %v1739 = vadd.f32 %v1731, %v1736
        %s1740 = sld [smem:[#allocation8 + $0xc]]
        %v1741 = vstv %s1740
        %v1742 = vmul.f32 %v1741, %v654
        %v1743 = vmul.f32 %v1741, %v650
        %v1744 = vmul.f32 %v1741, %v655
        %s1745 = sld [smem:[#allocation8 + $0x3d]]
        %v1746 = vstv %s1745
        %v1747 = vmul.f32 %v1746, %v666
        %v1748 = vmul.f32 %v1746, %v662
        %v1749 = vmul.f32 %v1746, %v667
        %v1750 = vadd.f32 %v1742, %v1747
        %v1751 = vadd.f32 %v1743, %v1748
        %v1752 = vadd.f32 %v1744, %v1749
        %1756 = vrot.lane.b32.xlu0 %v1750, 112
        %v1757 = vpop.permute.xlu0 %1756
        %1758 = vrot.lane.b32.xlu0 %v1751, 112
        %v1759 = vpop.permute.xlu0 %1758
        %1760 = vrot.lane.b32.xlu0 %v1752, 112
        %v1761 = vpop.permute.xlu0 %1760
        %v1762 = vsel %vm705, %v1757, %v1759
        %v1763 = vsel %vm705, %v1759, %v1761
        %v1767 = vadd.f32 %v1737, %v1762
        %v1768 = vadd.f32 %v1738, %v1763
        %v1769 = vadd.f32 %v1739, %v1761
        %s1770 = sld [smem:[#allocation8 + $0x13]]
        %v1771 = vstv %s1770
        %v1772 = vmul.f32 %v1771, %v654
        %v1773 = vmul.f32 %v1771, %v650
        %v1774 = vmul.f32 %v1771, %v655
        %s1775 = sld [smem:[#allocation8 + $0x44]]
        %v1776 = vstv %s1775
        %v1777 = vmul.f32 %v1776, %v666
        %v1778 = vmul.f32 %v1776, %v662
        %v1779 = vmul.f32 %v1776, %v667
        %v1780 = vadd.f32 %v1772, %v1777
        %v1781 = vadd.f32 %v1773, %v1778
        %v1782 = vadd.f32 %v1774, %v1779
        %1786 = vrot.lane.b32.xlu0 %v1780, 96
        %v1787 = vpop.permute.xlu0 %1786
        %1788 = vrot.lane.b32.xlu0 %v1781, 96
        %v1789 = vpop.permute.xlu0 %1788
        %1790 = vrot.lane.b32.xlu0 %v1782, 96
        %v1791 = vpop.permute.xlu0 %1790
        %v1792 = vsel %vm734, %v1787, %v1789
        %v1793 = vsel %vm734, %v1789, %v1791
        %v1797 = vadd.f32 %v1767, %v1792
        %v1798 = vadd.f32 %v1768, %v1793
        %v1799 = vadd.f32 %v1769, %v1791
        %s1800 = sld [smem:[#allocation8 + $0x1a]]
        %v1801 = vstv %s1800
        %v1802 = vmul.f32 %v1801, %v654
        %v1803 = vmul.f32 %v1801, %v650
        %v1804 = vmul.f32 %v1801, %v655
        %s1805 = sld [smem:[#allocation8 + $0x4b]]
        %v1806 = vstv %s1805
        %v1807 = vmul.f32 %v1806, %v666
        %v1808 = vmul.f32 %v1806, %v662
        %v1809 = vmul.f32 %v1806, %v667
        %v1810 = vadd.f32 %v1802, %v1807
        %v1811 = vadd.f32 %v1803, %v1808
        %v1812 = vadd.f32 %v1804, %v1809
        %1816 = vrot.lane.b32.xlu0 %v1810, 80
        %v1817 = vpop.permute.xlu0 %1816
        %1818 = vrot.lane.b32.xlu0 %v1811, 80
        %v1819 = vpop.permute.xlu0 %1818
        %1820 = vrot.lane.b32.xlu0 %v1812, 80
        %v1821 = vpop.permute.xlu0 %1820
        %v1822 = vsel %vm763, %v1817, %v1819
        %v1823 = vsel %vm763, %v1819, %v1821
        %v1827 = vadd.f32 %v1797, %v1822
        %v1828 = vadd.f32 %v1798, %v1823
        %v1829 = vadd.f32 %v1799, %v1821
        %s1830 = sld [smem:[#allocation8 + $0x21]]
        %v1831 = vstv %s1830
        %v1832 = vmul.f32 %v1831, %v654
        %v1833 = vmul.f32 %v1831, %v650
        %v1834 = vmul.f32 %v1831, %v655
        %s1835 = sld [smem:[#allocation8 + $0x52]]
        %v1836 = vstv %s1835
        %v1837 = vmul.f32 %v1836, %v666
        %v1838 = vmul.f32 %v1836, %v662
        %v1839 = vmul.f32 %v1836, %v667
        %v1840 = vadd.f32 %v1832, %v1837
        %v1841 = vadd.f32 %v1833, %v1838
        %v1842 = vadd.f32 %v1834, %v1839
        %1846 = vrot.lane.b32.xlu0 %v1840, 64
        %v1847 = vpop.permute.xlu0 %1846
        %1848 = vrot.lane.b32.xlu0 %v1841, 64
        %v1849 = vpop.permute.xlu0 %1848
        %1850 = vrot.lane.b32.xlu0 %v1842, 64
        %v1851 = vpop.permute.xlu0 %1850
        %v1852 = vsel %vm792, %v1847, %v1849
        %v1853 = vsel %vm792, %v1849, %v1851
        %v1857 = vadd.f32 %v1827, %v1852
        %v1858 = vadd.f32 %v1828, %v1853
        %v1859 = vadd.f32 %v1829, %v1851
        %s1860 = sld [smem:[#allocation8 + $0x28]]
        %v1861 = vstv %s1860
        %v1862 = vmul.f32 %v1861, %v654
        %v1863 = vmul.f32 %v1861, %v650
        %v1864 = vmul.f32 %v1861, %v655
        %s1865 = sld [smem:[#allocation8 + $0x59]]
        %v1866 = vstv %s1865
        %v1867 = vmul.f32 %v1866, %v666
        %v1868 = vmul.f32 %v1866, %v662
        %v1869 = vmul.f32 %v1866, %v667
        %v1870 = vadd.f32 %v1862, %v1867
        %v1871 = vadd.f32 %v1863, %v1868
        %v1872 = vadd.f32 %v1864, %v1869
        %1876 = vrot.lane.b32.xlu0 %v1870, 48
        %v1877 = vpop.permute.xlu0 %1876
        %1878 = vrot.lane.b32.xlu0 %v1871, 48
        %v1879 = vpop.permute.xlu0 %1878
        %1880 = vrot.lane.b32.xlu0 %v1872, 48
        %v1881 = vpop.permute.xlu0 %1880
        %v1882 = vsel %vm821, %v1877, %v1879
        %v1883 = vsel %vm821, %v1879, %v1881
        %v1887 = vadd.f32 %v1857, %v1882
        %v1888 = vadd.f32 %v1858, %v1883
        %v1889 = vadd.f32 %v1859, %v1881
        %s1890 = sld [smem:[#allocation8 + $0x2f]]
        %v1891 = vstv %s1890
        %v1892 = vmul.f32 %v1891, %v654
        %v1893 = vmul.f32 %v1891, %v650
        %v1894 = vmul.f32 %v1891, %v655
        %s1895 = sld [smem:[#allocation8 + $0x60]]
        %v1896 = vstv %s1895
        %v1897 = vmul.f32 %v1896, %v666
        %v1898 = vmul.f32 %v1896, %v662
        %v1899 = vmul.f32 %v1896, %v667
        %v1900 = vadd.f32 %v1892, %v1897
        %v1901 = vadd.f32 %v1893, %v1898
        %v1902 = vadd.f32 %v1894, %v1899
        %1906 = vrot.lane.b32.xlu0 %v1900, 32
        %v1907 = vpop.permute.xlu0 %1906
        %1908 = vrot.lane.b32.xlu0 %v1901, 32
        %v1909 = vpop.permute.xlu0 %1908
        %1910 = vrot.lane.b32.xlu0 %v1902, 32
        %v1911 = vpop.permute.xlu0 %1910
        %v1912 = vsel %vm850, %v1907, %v1909
        %v1913 = vsel %vm850, %v1909, %v1911
        %v1917 = vadd.f32 %v1887, %v1912
        %v1918 = vadd.f32 %v1888, %v1913
        %v1919 = vadd.f32 %v1889, %v1911
        %vm1920 = vcmp.ge.s32.totalorder %v671, 4294967294
        %vm1921 = vcmp.ge.s32.totalorder %v672, 4294967294
        %vm1922 = vcmp.lt.s32.totalorder %v671, 14
        %vm1923 = vcmp.lt.s32.totalorder %v672, 14
        %vm1924 = vmand %vm1920, %vm1922
        %vm1925 = vmand %vm1921, %vm1923
        %1929 = vrot.lane.b32.xlu0 %v1917, 123
        %v1930 = vpop.permute.xlu0 %1929
        %1931 = vrot.lane.b32.xlu0 %v1918, 123
        %v1932 = vpop.permute.xlu0 %1931
        %1933 = vrot.lane.b32.xlu0 %v1919, 123
        %v1934 = vpop.permute.xlu0 %1933
        %vm1935 = vcmask 1006592
        %v1936 = vsel %vm1935, %v1930, %v1932
        %v1937 = vsel %vm1935, %v1932, %v1934
        %v1940 = vsel %vm1924, %v1936, 0.0
        %v1941 = vsel %vm1925, %v1937, 0.0
        %v1942 = vadd.f32 %v1725, %v1940
        %v1943 = vadd.f32 %v1726, %v1941
        %s1944 = sld [smem:[#allocation8 + $0x6]]
        %v1945 = vstv %s1944
        %v1946 = vmul.f32 %v1945, %v654
        %v1947 = vmul.f32 %v1945, %v650
        %v1948 = vmul.f32 %v1945, %v655
        %s1949 = sld [smem:[#allocation8 + $0x37]]
        %v1950 = vstv %s1949
        %v1951 = vmul.f32 %v1950, %v666
        %v1952 = vmul.f32 %v1950, %v662
        %v1953 = vmul.f32 %v1950, %v667
        %v1954 = vadd.f32 %v1946, %v1951
        %v1955 = vadd.f32 %v1947, %v1952
        %v1956 = vadd.f32 %v1948, %v1953
        %s1957 = sld [smem:[#allocation8 + $0xd]]
        %v1958 = vstv %s1957
        %v1959 = vmul.f32 %v1958, %v654
        %v1960 = vmul.f32 %v1958, %v650
        %v1961 = vmul.f32 %v1958, %v655
        %s1962 = sld [smem:[#allocation8 + $0x3e]]
        %v1963 = vstv %s1962
        %v1964 = vmul.f32 %v1963, %v666
        %v1965 = vmul.f32 %v1963, %v662
        %v1966 = vmul.f32 %v1963, %v667
        %v1967 = vadd.f32 %v1959, %v1964
        %v1968 = vadd.f32 %v1960, %v1965
        %v1969 = vadd.f32 %v1961, %v1966
        %1973 = vrot.lane.b32.xlu0 %v1967, 112
        %v1974 = vpop.permute.xlu0 %1973
        %1975 = vrot.lane.b32.xlu0 %v1968, 112
        %v1976 = vpop.permute.xlu0 %1975
        %1977 = vrot.lane.b32.xlu0 %v1969, 112
        %v1978 = vpop.permute.xlu0 %1977
        %v1979 = vsel %vm705, %v1974, %v1976
        %v1980 = vsel %vm705, %v1976, %v1978
        %v1984 = vadd.f32 %v1954, %v1979
        %v1985 = vadd.f32 %v1955, %v1980
        %v1986 = vadd.f32 %v1956, %v1978
        %s1987 = sld [smem:[#allocation8 + $0x14]]
        %v1988 = vstv %s1987
        %v1989 = vmul.f32 %v1988, %v654
        %v1990 = vmul.f32 %v1988, %v650
        %v1991 = vmul.f32 %v1988, %v655
        %s1992 = sld [smem:[#allocation8 + $0x45]]
        %v1993 = vstv %s1992
        %v1994 = vmul.f32 %v1993, %v666
        %v1995 = vmul.f32 %v1993, %v662
        %v1996 = vmul.f32 %v1993, %v667
        %v1997 = vadd.f32 %v1989, %v1994
        %v1998 = vadd.f32 %v1990, %v1995
        %v1999 = vadd.f32 %v1991, %v1996
        %2003 = vrot.lane.b32.xlu0 %v1997, 96
        %v2004 = vpop.permute.xlu0 %2003
        %2005 = vrot.lane.b32.xlu0 %v1998, 96
        %v2006 = vpop.permute.xlu0 %2005
        %2007 = vrot.lane.b32.xlu0 %v1999, 96
        %v2008 = vpop.permute.xlu0 %2007
        %v2009 = vsel %vm734, %v2004, %v2006
        %v2010 = vsel %vm734, %v2006, %v2008
        %v2014 = vadd.f32 %v1984, %v2009
        %v2015 = vadd.f32 %v1985, %v2010
        %v2016 = vadd.f32 %v1986, %v2008
        %s2017 = sld [smem:[#allocation8 + $0x1b]]
        %v2018 = vstv %s2017
        %v2019 = vmul.f32 %v2018, %v654
        %v2020 = vmul.f32 %v2018, %v650
        %v2021 = vmul.f32 %v2018, %v655
        %s2022 = sld [smem:[#allocation8 + $0x4c]]
        %v2023 = vstv %s2022
        %v2024 = vmul.f32 %v2023, %v666
        %v2025 = vmul.f32 %v2023, %v662
        %v2026 = vmul.f32 %v2023, %v667
        %v2027 = vadd.f32 %v2019, %v2024
        %v2028 = vadd.f32 %v2020, %v2025
        %v2029 = vadd.f32 %v2021, %v2026
        %2033 = vrot.lane.b32.xlu0 %v2027, 80
        %v2034 = vpop.permute.xlu0 %2033
        %2035 = vrot.lane.b32.xlu0 %v2028, 80
        %v2036 = vpop.permute.xlu0 %2035
        %2037 = vrot.lane.b32.xlu0 %v2029, 80
        %v2038 = vpop.permute.xlu0 %2037
        %v2039 = vsel %vm763, %v2034, %v2036
        %v2040 = vsel %vm763, %v2036, %v2038
        %v2044 = vadd.f32 %v2014, %v2039
        %v2045 = vadd.f32 %v2015, %v2040
        %v2046 = vadd.f32 %v2016, %v2038
        %s2047 = sld [smem:[#allocation8 + $0x22]]
        %v2048 = vstv %s2047
        %v2049 = vmul.f32 %v2048, %v654
        %v2050 = vmul.f32 %v2048, %v650
        %v2051 = vmul.f32 %v2048, %v655
        %s2052 = sld [smem:[#allocation8 + $0x53]]
        %v2053 = vstv %s2052
        %v2054 = vmul.f32 %v2053, %v666
        %v2055 = vmul.f32 %v2053, %v662
        %v2056 = vmul.f32 %v2053, %v667
        %v2057 = vadd.f32 %v2049, %v2054
        %v2058 = vadd.f32 %v2050, %v2055
        %v2059 = vadd.f32 %v2051, %v2056
        %2063 = vrot.lane.b32.xlu0 %v2057, 64
        %v2064 = vpop.permute.xlu0 %2063
        %2065 = vrot.lane.b32.xlu0 %v2058, 64
        %v2066 = vpop.permute.xlu0 %2065
        %2067 = vrot.lane.b32.xlu0 %v2059, 64
        %v2068 = vpop.permute.xlu0 %2067
        %v2069 = vsel %vm792, %v2064, %v2066
        %v2070 = vsel %vm792, %v2066, %v2068
        %v2074 = vadd.f32 %v2044, %v2069
        %v2075 = vadd.f32 %v2045, %v2070
        %v2076 = vadd.f32 %v2046, %v2068
        %s2077 = sld [smem:[#allocation8 + $0x29]]
        %v2078 = vstv %s2077
        %v2079 = vmul.f32 %v2078, %v654
        %v2080 = vmul.f32 %v2078, %v650
        %v2081 = vmul.f32 %v2078, %v655
        %s2082 = sld [smem:[#allocation8 + $0x5a]]
        %v2083 = vstv %s2082
        %v2084 = vmul.f32 %v2083, %v666
        %v2085 = vmul.f32 %v2083, %v662
        %v2086 = vmul.f32 %v2083, %v667
        %v2087 = vadd.f32 %v2079, %v2084
        %v2088 = vadd.f32 %v2080, %v2085
        %v2089 = vadd.f32 %v2081, %v2086
        %2093 = vrot.lane.b32.xlu0 %v2087, 48
        %v2094 = vpop.permute.xlu0 %2093
        %2095 = vrot.lane.b32.xlu0 %v2088, 48
        %v2096 = vpop.permute.xlu0 %2095
        %2097 = vrot.lane.b32.xlu0 %v2089, 48
        %v2098 = vpop.permute.xlu0 %2097
        %v2099 = vsel %vm821, %v2094, %v2096
        %v2100 = vsel %vm821, %v2096, %v2098
        %v2104 = vadd.f32 %v2074, %v2099
        %v2105 = vadd.f32 %v2075, %v2100
        %v2106 = vadd.f32 %v2076, %v2098
        %s2107 = sld [smem:[#allocation8 + $0x30]]
        %v2108 = vstv %s2107
        %v2109 = vmul.f32 %v2108, %v654
        %v2110 = vmul.f32 %v2108, %v650
        %v2111 = vmul.f32 %v2108, %v655
        %s2112 = sld [smem:[#allocation8 + $0x61]]
        %v2113 = vstv %s2112
        %v2114 = vmul.f32 %v2113, %v666
        %v2115 = vmul.f32 %v2113, %v662
        %v2116 = vmul.f32 %v2113, %v667
        %v2117 = vadd.f32 %v2109, %v2114
        %v2118 = vadd.f32 %v2110, %v2115
        %v2119 = vadd.f32 %v2111, %v2116
        %2123 = vrot.lane.b32.xlu0 %v2117, 32
        %v2124 = vpop.permute.xlu0 %2123
        %2125 = vrot.lane.b32.xlu0 %v2118, 32
        %v2126 = vpop.permute.xlu0 %2125
        %2127 = vrot.lane.b32.xlu0 %v2119, 32
        %v2128 = vpop.permute.xlu0 %2127
        %v2129 = vsel %vm850, %v2124, %v2126
        %v2130 = vsel %vm850, %v2126, %v2128
        %v2134 = vadd.f32 %v2104, %v2129
        %v2135 = vadd.f32 %v2105, %v2130
        %v2136 = vadd.f32 %v2106, %v2128
        %vm2137 = vcmp.ge.s32.totalorder %v671, 4294967293
        %vm2138 = vcmp.ge.s32.totalorder %v672, 4294967293
        %vm2139 = vcmp.lt.s32.totalorder %v671, 13
        %vm2140 = vcmp.lt.s32.totalorder %v672, 13
        %vm2141 = vmand %vm2137, %vm2139
        %vm2142 = vmand %vm2138, %vm2140
        %2146 = vrot.lane.b32.xlu0 %v2134, 122
        %v2147 = vpop.permute.xlu0 %2146
        %2148 = vrot.lane.b32.xlu0 %v2135, 122
        %v2149 = vpop.permute.xlu0 %2148
        %2150 = vrot.lane.b32.xlu0 %v2136, 122
        %v2151 = vpop.permute.xlu0 %2150
        %vm2152 = vcmask 998400
        %v2153 = vsel %vm2152, %v2147, %v2149
        %v2154 = vsel %vm2152, %v2149, %v2151
        %v2157 = vsel %vm2141, %v2153, 0.0
        %v2158 = vsel %vm2142, %v2154, 0.0
        %v2159 = vadd.f32 %v1942, %v2157
        %v2160 = vadd.f32 %v1943, %v2158
        %s2161 = sld [smem:[#allocation2]]
        %v2162 = vstv %s2161
        %v2163 = vadd.f32 %v2159, %v2162
        %v2164 = vadd.f32 %v2160, %v2162
        %v2165 = vxor.u32 %v2163, 2147483648
        %v2166 = vxor.u32 %v2164, 2147483648
        %v2167 = vmul.f32 %v2165, 1.442695
        %v2168 = vpow.pop %v2167
        %v2169 = vmul.f32 %v2166, 1.442695
        %v2170 = vpow.pop %v2169
        %v2171 = vadd.f32 %v2168, 1.0
        %v2172 = vadd.f32 %v2170, 1.0
        %v2173 = vrcp.pop %v2171
        %v2174 = vmul.f32 1.0, %v2173
        %v2175 = vrcp.pop %v2172
        %v2176 = vmul.f32 1.0, %v2175
        %v2177 = vlaneseq
        %v2178 = vshrl.u32 %v2177, 7
        %v2179 = vsub.s32 0, %v2178
        %v2180 = vrot.slane %v2174, %v2179
        %v2181 = vlaneseq
        %v2182 = vshrl.u32 %v2181, 7
        %v2183 = vsub.s32 0, %v2182
        %v2184 = vrot.slane %v2176, %v2183
        %v2185 = vmul.f32 %v597, %v2180
        %v2186 = vmul.f32 %v598, %v2184
        %v2187 = vmul.f32 %v599, %v2180
        %v2188 = vmul.f32 %v600, %v2184
        %v2189 = vmul.f32 %v601, %v2180
        %v2190 = vmul.f32 %v602, %v2184
        %v2191 = vmul.f32 %v603, %v2180
        %v2192 = vmul.f32 %v604, %v2184
        %2193 = vst [vmem:[%s324] sm:$0xff] %v2185
        %2194 = vst [vmem:[%s324 + $0x8] sm:$0xff] %v2186
        %2195 = vst [vmem:[%s324 + $0x10] sm:$0xff] %v2187
        %2196 = vst [vmem:[%s324 + $0x18] sm:$0xff] %v2188
        %2197 = vst [vmem:[%s324 + $0x20] sm:$0xff] %v2189
        %2198 = vst [vmem:[%s324 + $0x28] sm:$0xff] %v2190
        %2199 = vst [vmem:[%s324 + $0x30] sm:$0xff] %v2191
        %2200 = vst [vmem:[%s324 + $0x38] sm:$0xff] %v2192
        %s2201 = sand.u32 %s187, 1
        %s2202 = scalar_lea.sflag [#allocation5], %s2201
        %s2203 = sand.u32 %s187, 1
        %s2204 = smul.addr %s2203, 64
        %s2205 = scalar_lea.vmem [#allocation10], %s2204
        // Predicated region
        $region61: #{tpu_custom_call.1} parent=47 // pred_check
          %p2206 = pneg %p197
        $region62: #{tpu_custom_call.1} parent=47 // pred_check_branch
          %2208 = sbr.rel (%p2206) target = $region64
        $region63: #{tpu_custom_call.1} parent=47 // pred_region
          %s2210 = ssub.s32 1024, 1024
          %2211 = vsyncadd %s2202, %s2210
          %s2212 = smul.addr %s27, 8
          %s2213 = smul.addr %s2212, 128
          %s2214 = scalar_lea.hbm %s7, %s2213
          %s2215 = sshll.u32 %s2205, 4
          %s2216 = int_to_ptr.vmem [resolvable:$true] %s2215
          %2221 = dma.vmem_to_hbm [thread:$0]  %s2216, 1024, %s2214, %s2202, 256, 256, 16
        $region64: #{tpu_custom_call.1} parent=47 // pred_fallthru
          _
      $region48: #{tpu_custom_call.1} parent=5 // pred_fallthru
        _
      %p2222 = scmp.le.s32.totalorder 2, %s22
      // Predicated region
      $region65: #{tpu_custom_call.1} parent=5 // pred_check
        %p2223 = pneg %p2222
      $region66: #{tpu_custom_call.1} parent=5 // pred_check_branch
        %2225 = sbr.rel (%p2223) target = $region68
      $region67: #{tpu_custom_call.1} parent=5 // pred_region
        %s2226 = ssub.s32 %s22, 2
        // Predicated region
        $region69: #{tpu_custom_call.1} parent=67 // pred_check
          %p2227 = pneg %p203
        $region70: #{tpu_custom_call.1} parent=67 // pred_check_branch
          %2229 = sbr.rel (%p2227) target = $region72
        $region71: #{tpu_custom_call.1} parent=67 // pred_region
          %s2230 = sand.u32 %s188, 1
          %s2231 = scalar_lea.sflag [#allocation5], %s2230
          %s2232 = sand.u32 %s188, 1
          %s2233 = smul.addr %s2232, 64
          %s2234 = scalar_lea.vmem [#allocation10], %s2233
          %2235 = dma.done %s2231, 1024
        $region72: #{tpu_custom_call.1} parent=67 // pred_fallthru
          _
      $region68: #{tpu_custom_call.1} parent=5 // pred_fallthru
        _
    $region6: #{tpu_custom_call.1} parent=1 // loop_footer
      %s26 = sadd.s32 1, %s22
    $region7: #{tpu_custom_call.1} parent=1 // loop_footer_branch
      %21 = sbr.rel target = $region3
    $region8: #{tpu_custom_call.1} parent=1 // loop_exit
      _
    %2236 = vsyncpa [#allocation4], 1
    %s2237 = scalar_lea.sflag [#allocation4], 1
    %2238 = vsyncpa %s2237, 1
    %2239 = vsyncpa [#allocation5], 1
    %s2240 = scalar_lea.sflag [#allocation5], 1
    %2241 = vsyncpa %s2240, 1
    %2242 = vsyncpa [#allocation6], 1
    %s2243 = scalar_lea.sflag [#allocation6], 1
    %2244 = vsyncpa %s2243, 1
    %2245 = vsyncpa [#allocation9], 1

</llo_original>
